<compile_context>
chip_gen: v7x
topology: tpu7x:2x2x1
jax: 0.10.0
libtpu: 0.0.40
codegen_flags: <defaults>
</compile_context>

<pallas_src>
import functools

import jax
import jax.numpy as jnp
from jax.experimental import pallas as pl
from jax.experimental.pallas import tpu as pltpu


def _block_spec(shape, index_map, buffer_count=None):
    """BlockSpec with optional pipeline_mode=pl.Buffered(n).

    Falls back to a plain BlockSpec if the installed JAX does not accept the
    pipeline_mode keyword.
    """
    if buffer_count is not None:
        try:
            return pl.BlockSpec(shape, index_map,
                                pipeline_mode=pl.Buffered(buffer_count))
        except TypeError:
            pass
    return pl.BlockSpec(shape, index_map)


def _vmem_limit_bytes():
    """Generation-aware VMEM budget with headroom for internal scratch."""
    try:
        cap = pltpu.get_tpu_info().vmem_capacity_bytes
    except Exception:
        cap = 64 * 1024 * 1024          # conservative (v7x physical VMEM)
    # v5e/v6e (128 MiB) -> ~102 MiB, v7x (64 MiB) -> ~48 MiB.
    return int(min(cap - 16 * 1024 * 1024, int(cap * 0.8)))


def _conv3x3_bn_relu_kernel(x_ref, w_ref, b_ref, o_ref, *, tile_h, wp,
                            offsets, precision):
    """One (image, row-tile) grid step: taps as matmuls + bias + ReLU.

    x_ref: (1, p_flat, Ck)          whole padded image, pixels flattened.
    w_ref: (n_taps, Ck, Cout_p)     BN-folded weights, tap-major.
    b_ref: (1, Cout_p)              BN-folded bias (f32).
    o_ref: (1, tile_h*wp, Cout_p)   output rows of this H tile (padded width).
    """
    rows = tile_h * wp
    base = pl.program_id(1) * rows          # multiple of 64 (tile_h%8, wp%8)

    def tap(t):
        start = base + offsets[t]
        if offsets[t] % 8 == 0:             # kh-shift windows are aligned
            start = pl.multiple_of(start, 8)
        return jnp.dot(x_ref[0, pl.ds(start, rows), :], w_ref[t],
                       preferred_element_type=jnp.float32,
                       precision=precision)

    acc = tap(0)                            # seed accumulator (no zero-fill)
    for t in range(1, len(offsets)):
        acc += tap(t)

    y = jnp.maximum(acc + b_ref[...].astype(jnp.float32), 0.0)
    o_ref[0] = y.astype(o_ref.dtype)


def single_conv_forward_nhwc(x_nhwc, params, *, tile_h=None,
                             act_dtype=jnp.bfloat16, eps=1e-5,
                             fuse_kw=None, precision=None):
    """single_conv forward, NHWC in -> NHWC out (channels-last fast path)."""
    N, H, W, cin = x_nhwc.shape
    w = params["w"]                                   # (Cout, Cin, 3, 3) OIHW
    cout = w.shape[0]

    # ---- fold conv bias + eval-mode BatchNorm into weights / one bias ------
    scale = params["gamma"] / jnp.sqrt(params["var"] + eps)      # (Cout,)
    w_f = w * scale[:, None, None, None]
    bias = (params["b"] - params["mean"]) * scale + params["beta"]

    # Lane-dense output: pad cout to a multiple of 128 (sliced off at the end).
    cout_p = max(128, pl.cdiv(cout, 128) * 128)
    # tap-major, matmul-ready: (9, Cin, Cout_p) with t = kh*3 + kw
    w9 = jnp.transpose(w_f, (2, 3, 1, 0)).reshape(9, cin, cout)
    w9 = jnp.pad(w9, ((0, 0), (0, 0), (0, cout_p - cout))).astype(act_dtype)
    bias_p = jnp.pad(bias, (0, cout_p - cout)).reshape(1, cout_p)
    bias_p = bias_p.astype(jnp.float32)

    if fuse_kw is None:
        fuse_kw = cin <= 32          # small K: fuse kw taps -> 3 matmuls K=3*cin

    # ---- tiling -------------------------------------------------------------
    wp = pl.cdiv(W + 2, 8) * 8       # padded row stride, sublane-aligned
    vmem_limit = _vmem_limit_bytes()
    h8 = pl.cdiv(H, 8) * 8
    if tile_h is None:
        out_bytes = jnp.dtype(act_dtype).itemsize
        per_row = cout_p * (2 * out_bytes + 4)     # 2x output tile + f32 acc
        target = min(2048, max(256, (vmem_limit // 3) // per_row))
        tile_h = max(8, ((target // wp) // 8) * 8)
    tile_h = max(8, min((tile_h // 8) * 8, h8))
    if N == 1 and tile_h >= 16 and pl.cdiv(H, tile_h) < 2:
        # v7x megacore: make sure there are >= 2 parallel grid steps.
        tile_h = max(8, pl.cdiv(pl.cdiv(H, 2), 8) * 8)
    hp = pl.cdiv(H, tile_h) * tile_h
    n_h = hp // tile_h

    # ---- pad + flatten pixels (channels last) -------------------------------
    # spatial pad: top 1, bottom hp-H+2 (kh=2 taps + flat-index overhang),
    # left 1, right wp-W-1 (extra zero columns, sliced off afterwards).
    x_pad = jnp.pad(x_nhwc.astype(act_dtype),
                    ((0, 0), (1, hp - H + 2), (1, wp - W - 1), (0, 0)))
    x_flat = x_pad.reshape(N, (hp + 3) * wp, cin)

    if fuse_kw:
        # Concatenate the three kw-shifted windows along channels: the kernel
        # then runs 3 sublane-aligned matmuls (one per kh) with K = 3*cin.
        x_in = jnp.concatenate(
            [x_flat[:, :-2, :], x_flat[:, 1:-1, :], x_flat[:, 2:, :]], axis=-1)
        w_in = w9.reshape(3, 3 * cin, cout_p)
        offsets = tuple(kh * wp for kh in range(3))
    else:
        x_in = x_flat
        w_in = w9
        offsets = tuple(kh * wp + kw for kh in range(3) for kw in range(3))

    p_flat = x_in.shape[1]
    cin_k = x_in.shape[2]
    n_taps = w_in.shape[0]

    kernel = functools.partial(_conv3x3_bn_relu_kernel, tile_h=tile_h, wp=wp,
                               offsets=offsets, precision=precision)

    out = pl.pallas_call(
        kernel,
        out_shape=jax.ShapeDtypeStruct((N, hp * wp, cout_p), act_dtype),
        grid_spec=pltpu.PrefetchScalarGridSpec(
            num_scalar_prefetch=0,
            grid=(N, n_h),
            in_specs=[
                # Whole padded image per batch element; its block index is
                # constant along the inner H-tile axis (DMA'd from HBM once
                # per image) and single-buffered to halve its VMEM cost.
                _block_spec((1, p_flat, cin_k), lambda n, i: (n, 0, 0),
                            buffer_count=1),
                _block_spec((n_taps, cin_k, cout_p), lambda n, i: (0, 0, 0),
                            buffer_count=1),
                _block_spec((1, cout_p), lambda n, i: (0, 0),
                            buffer_count=1),
            ],
            out_specs=pl.BlockSpec((1, tile_h * wp, cout_p),
                                   lambda n, i: (n, i, 0)),
        ),
        compiler_params=pltpu.CompilerParams(
            dimension_semantics=("parallel", "parallel"),
            vmem_limit_bytes=vmem_limit,
        ),
    )(x_in, w_in, bias_p)

    # Drop padded rows / columns / channels.
    return out.reshape(N, hp, wp, cout_p)[:, :H, :W, :cout]


def single_conv_forward(x, params, **kwargs):
    """single_conv forward, PyTorch layout: (N, Cin, H, W) -> (N, Cout, H, W)."""
    y = single_conv_forward_nhwc(jnp.transpose(x, (0, 2, 3, 1)), params,
                                 **kwargs)
    return jnp.transpose(y, (0, 3, 1, 2))


def _reference(x, params, eps=1e-5):
    """Pure-JAX reference of the PyTorch forward (eval-mode BN)."""
    y = jax.lax.conv_general_dilated(
        x, params["w"], window_strides=(1, 1), padding="SAME",
        dimension_numbers=("NCHW", "OIHW", "NCHW"),
        precision=jax.lax.Precision.HIGHEST)
    y = y + params["b"][None, :, None, None]
    s = (params["gamma"] / jnp.sqrt(params["var"] + eps))[None, :, None, None]
    y = (y - params["mean"][None, :, None, None]) * s \
        + params["beta"][None, :, None, None]
    return jnp.maximum(y, 0.0)


def init_params(key, ch_in, ch_out):
    ks = jax.random.split(key, 6)
    return {
        # Conv weight in PyTorch OIHW layout, plus bias.
        "w": 0.2 * jax.random.normal(ks[0], (ch_out, ch_in, 3, 3), jnp.float32),
        "b": 0.1 * jax.random.normal(ks[1], (ch_out,), jnp.float32),
        # BatchNorm affine params + running stats (eval mode).
        "gamma": 1.0 + 0.1 * jax.random.normal(ks[2], (ch_out,), jnp.float32),
        "beta": 0.1 * jax.random.normal(ks[3], (ch_out,), jnp.float32),
        "mean": 0.1 * jax.random.normal(ks[4], (ch_out,), jnp.float32),
        "var": 0.5 + jax.random.uniform(ks[5], (ch_out,), jnp.float32),
    }


if __name__ == "__main__":
    N, C_in, C_out, H, W = 2, 4, 8, 16, 16
    key = jax.random.PRNGKey(0)
    kx, kp = jax.random.split(key)
    x = jax.random.normal(kx, (N, C_in, H, W), jnp.float32)
    params = init_params(kp, C_in, C_out)

    ref = _reference(x, params)

    # f32 I/O path (kw-fused), strict-ish parity with the PyTorch module.
    f32_fwd = jax.jit(functools.partial(single_conv_forward,
                                        act_dtype=jnp.float32))
    out32 = jax.block_until_ready(f32_fwd(x, params))
    assert out32.shape == (N, C_out, H, W)
    # Tolerance covers the MXU's default f32 (bf16-grade) matmul precision.
    assert jnp.allclose(out32, ref, atol=3e-2, rtol=3e-2), (
        f"f32 mismatch, max abs err = {float(jnp.max(jnp.abs(out32 - ref)))}")

    # f32 I/O, unfused 9-tap path (exercises the second kernel variant).
    f32_unfused = jax.jit(functools.partial(single_conv_forward,
                                            act_dtype=jnp.float32,
                                            fuse_kw=False))
    out32u = jax.block_until_ready(f32_unfused(x, params))
    assert jnp.allclose(out32u, ref, atol=3e-2, rtol=3e-2), (
        f"unfused mismatch, max abs err = "
        f"{float(jnp.max(jnp.abs(out32u - ref)))}")

    # Default bf16 I/O path (half HBM traffic / half VMEM footprint).
    out_bf16 = jax.block_until_ready(jax.jit(single_conv_forward)(x, params))
    assert out_bf16.shape == (N, C_out, H, W)
    out_bf16 = out_bf16.astype(jnp.float32)
    assert jnp.allclose(out_bf16, ref, atol=1.5e-1, rtol=1.5e-1), (
        f"bf16 mismatch, max abs err = "
        f"{float(jnp.max(jnp.abs(out_bf16 - ref)))}")

    print("KERNEL_OK")
</pallas_src>

<mosaic_0001>
module attributes {stable_mosaic.version = 11 : i64} {
  func.func @_conv3x3_bn_relu_kernel(%arg0: i32, %arg1: i32, %arg2: memref<1x454x12xf32, #tpu.memory_space<vmem>>, %arg3: memref<3x12x128xf32, #tpu.memory_space<vmem>>, %arg4: memref<1x128xf32, #tpu.memory_space<vmem>>, %arg5: memref<1x384x128xf32, #tpu.memory_space<vmem>>) attributes {dimension_semantics = [#tpu.dimension_semantics<parallel>, #tpu.dimension_semantics<parallel>], iteration_bounds = array<i64: 2, 1>, scalar_prefetch = 0 : i64, scratch_operands = 0 : i64, tpu.core_type = #tpu.core_type<tc>, window_params = [{pipeline_mode = #tpu.pipeline_mode<synchronous>, transform_indices = @transform_0, window_bounds = array<i64: 1, 454, 12>}, {pipeline_mode = #tpu.pipeline_mode<synchronous>, transform_indices = @transform_1, window_bounds = array<i64: 3, 12, 128>}, {pipeline_mode = #tpu.pipeline_mode<synchronous>, transform_indices = @transform_2, window_bounds = array<i64: 1, 128>}, {transform_indices = @transform_3, window_bounds = array<i64: 1, 384, 128>}]} {
    %c384_i32 = arith.constant 384 : i32
    %0 = arith.muli %arg1, %c384_i32 : i32
    %c0_i32 = arith.constant 0 : i32
    %1 = arith.addi %0, %c0_i32 : i32
    %2 = tpu.assume_multiple %1, 8 : i32
    %c0 = arith.constant 0 : index
    %3 = arith.index_cast %2 : i32 to index
    %c0_0 = arith.constant 0 : index
    %4 = vector.load %arg2[%c0, %3, %c0_0] : memref<1x454x12xf32, #tpu.memory_space<vmem>>, vector<1x384x12xf32>
    %5 = vector.shape_cast %4 : vector<1x384x12xf32> to vector<384x12xf32>
    %c0_1 = arith.constant 0 : index
    %c0_2 = arith.constant 0 : index
    %c0_3 = arith.constant 0 : index
    %6 = vector.load %arg3[%c0_1, %c0_2, %c0_3] : memref<3x12x128xf32, #tpu.memory_space<vmem>>, vector<1x12x128xf32>
    %7 = vector.shape_cast %6 : vector<1x12x128xf32> to vector<12x128xf32>
    %cst = arith.constant dense<0.000000e+00> : vector<384x128xf32>
    %8 = tpu.matmul %5, %7, %cst {dimension_numbers = #tpu.dot_dimension_numbers<[1], [0], [0], [1], [0, 0, 1, 1], [], []>} : vector<384x12xf32>, vector<12x128xf32>, vector<384x128xf32> -> vector<384x128xf32>
    %c24_i32 = arith.constant 24 : i32
    %9 = arith.addi %0, %c24_i32 : i32
    %10 = tpu.assume_multiple %9, 8 : i32
    %c0_4 = arith.constant 0 : index
    %11 = arith.index_cast %10 : i32 to index
    %c0_5 = arith.constant 0 : index
    %12 = vector.load %arg2[%c0_4, %11, %c0_5] : memref<1x454x12xf32, #tpu.memory_space<vmem>>, vector<1x384x12xf32>
    %13 = vector.shape_cast %12 : vector<1x384x12xf32> to vector<384x12xf32>
    %c1 = arith.constant 1 : index
    %c0_6 = arith.constant 0 : index
    %c0_7 = arith.constant 0 : index
    %14 = vector.load %arg3[%c1, %c0_6, %c0_7] : memref<3x12x128xf32, #tpu.memory_space<vmem>>, vector<1x12x128xf32>
    %15 = vector.shape_cast %14 : vector<1x12x128xf32> to vector<12x128xf32>
    %cst_8 = arith.constant dense<0.000000e+00> : vector<384x128xf32>
    %16 = tpu.matmul %13, %15, %cst_8 {dimension_numbers = #tpu.dot_dimension_numbers<[1], [0], [0], [1], [0, 0, 1, 1], [], []>} : vector<384x12xf32>, vector<12x128xf32>, vector<384x128xf32> -> vector<384x128xf32>
    %17 = arith.addf %8, %16 : vector<384x128xf32>
    %c48_i32 = arith.constant 48 : i32
    %18 = arith.addi %0, %c48_i32 : i32
    %19 = tpu.assume_multiple %18, 8 : i32
    %c0_9 = arith.constant 0 : index
    %20 = arith.index_cast %19 : i32 to index
    %c0_10 = arith.constant 0 : index
    %21 = vector.load %arg2[%c0_9, %20, %c0_10] : memref<1x454x12xf32, #tpu.memory_space<vmem>>, vector<1x384x12xf32>
    %22 = vector.shape_cast %21 : vector<1x384x12xf32> to vector<384x12xf32>
    %c2 = arith.constant 2 : index
    %c0_11 = arith.constant 0 : index
    %c0_12 = arith.constant 0 : index
    %23 = vector.load %arg3[%c2, %c0_11, %c0_12] : memref<3x12x128xf32, #tpu.memory_space<vmem>>, vector<1x12x128xf32>
    %24 = vector.shape_cast %23 : vector<1x12x128xf32> to vector<12x128xf32>
    %cst_13 = arith.constant dense<0.000000e+00> : vector<384x128xf32>
    %25 = tpu.matmul %22, %24, %cst_13 {dimension_numbers = #tpu.dot_dimension_numbers<[1], [0], [0], [1], [0, 0, 1, 1], [], []>} : vector<384x12xf32>, vector<12x128xf32>, vector<384x128xf32> -> vector<384x128xf32>
    %26 = arith.addf %17, %25 : vector<384x128xf32>
    %c0_14 = arith.constant 0 : index
    %c0_15 = arith.constant 0 : index
    %27 = vector.load %arg4[%c0_14, %c0_15] : memref<1x128xf32, #tpu.memory_space<vmem>>, vector<1x128xf32>
    %28 = vector.broadcast %27 : vector<1x128xf32> to vector<384x128xf32>
    %29 = arith.addf %26, %28 : vector<384x128xf32>
    %cst_16 = arith.constant 0.000000e+00 : f32
    %30 = vector.broadcast %cst_16 : f32 to vector<384x128xf32>
    %31 = arith.maximumf %29, %30 : vector<384x128xf32>
    %c0_17 = arith.constant 0 : index
    %c0_18 = arith.constant 0 : index
    %c0_19 = arith.constant 0 : index
    %32 = vector.load %arg5[%c0_17, %c0_18, %c0_19] : memref<1x384x128xf32, #tpu.memory_space<vmem>>, vector<1x384x128xf32>
    %33 = vector.shape_cast %32 : vector<1x384x128xf32> to vector<384x128xf32>
    %34 = vector.shape_cast %31 : vector<384x128xf32> to vector<1x384x128xf32>
    tpu.vector_store %arg5[%c0_17, %c0_18, %c0_19], %34 {strides = array<i32>} : memref<1x384x128xf32, #tpu.memory_space<vmem>>, vector<1x384x128xf32>,
    return
  }
  func.func @transform_0(%arg0: i32, %arg1: i32) -> (i32, i32, i32) {
    %c0_i32 = arith.constant 0 : i32
    %c0_i32_0 = arith.constant 0 : i32
    %c0_i32_1 = arith.constant 0 : i32
    return %arg0, %c0_i32, %c0_i32_0 : i32, i32, i32
  }
  func.func @transform_1(%arg0: i32, %arg1: i32) -> (i32, i32, i32) {
    %c0_i32 = arith.constant 0 : i32
    %c0_i32_0 = arith.constant 0 : i32
    %c0_i32_1 = arith.constant 0 : i32
    %c0_i32_2 = arith.constant 0 : i32
    return %c0_i32, %c0_i32_0, %c0_i32_1 : i32, i32, i32
  }
  func.func @transform_2(%arg0: i32, %arg1: i32) -> (i32, i32) {
    %c0_i32 = arith.constant 0 : i32
    %c0_i32_0 = arith.constant 0 : i32
    %c0_i32_1 = arith.constant 0 : i32
    return %c0_i32, %c0_i32_0 : i32, i32
  }
  func.func @transform_3(%arg0: i32, %arg1: i32) -> (i32, i32, i32) {
    %c0_i32 = arith.constant 0 : i32
    %c0_i32_0 = arith.constant 0 : i32
    return %arg0, %arg1, %c0_i32 : i32, i32, i32
  }
}

</mosaic_0001>

<llo_original>
// kernel: single_conv_forward.1
$region0: #{single_conv_forward.1}
  #allocation0 [shape = 'u32[]', space=smem, size = 0x4, offset = 0x4, fixed_abs, tag = 'smem constant byte address 0x4 - core index']
  #allocation1 [shape = 'u32[144,128]{1,0:T(1,128)}', space=vmem, size = 0x12000, scoped, tag = 'internal scratch']
  %s0 = inlined_call_operand.vmem [shape: f32[2,454,12], index: 0, kind: input, shape index: {}]
  %s1 = inlined_call_operand.vmem [shape: f32[3,12,128], index: 1, kind: input, shape index: {}]
  %s2 = inlined_call_operand.vmem [shape: f32[1,128], index: 2, kind: input, shape index: {}]
  %s3 = inlined_call_operand.vmem [shape: f32[2,384,128], index: 3, kind: output, shape index: {}]
  %s4 = sld [smem:[#allocation0]]
  $region45: #{single_conv_forward.1} parent=0
    _
  %s6 = ssub.s32 1, %s4
  %s7 = scalar_select 0, %s6, %s4
  loop: start=0, step=1, limit=4
  $region2: #{single_conv_forward.1} parent=0 // loop_pre_header
    _
  $region3: #{single_conv_forward.1} parent=0 // loop_header
    %s9 = sphi 0, %s13
    %p10 = scmp.ge.s32.totalorder %s9, 4
    %s16 = sphi 0, %s28
    %s17 = sphi 0, %s24
    %s18 = sphi 0, %s16
    %s19 = sphi 0, %s17
    %s20 = sphi 0, %s18
    %s21 = sphi 0, %s19
    %s31 = sphi 0, %s33
    %s34 = sphi 0, %s31
    %s35 = sphi 0, %s34
    %s51 = sphi 0, %s35
    %s55 = sphi 0, %s55
    %s57 = sphi 0, %s55
    %s58 = sphi 0, %s57
    %s72 = sphi 0, %s58
    %s76 = sphi 0, %s76
    %s78 = sphi 0, %s76
    %s79 = sphi 0, %s78
    %s93 = sphi 0, %s79
    %s101 = sphi 0, %s103
    %s104 = sphi 0, %s101
    %s105 = sphi 0, %s104
    %s121 = sphi 0, %s105
  $region4: #{single_conv_forward.1} parent=0 // loop_header_branch
    %12 = sbr.rel (%p10) target = $region8
  $region5: #{single_conv_forward.1} parent=0 // loop_body
    %s14 = ssub.s32 %s9, 1
    %s15 = ssub.s32 %s9, 2
    %s22 = sadd.s32 1, %s17
    %p23 = scmp.ge.s32.totalorder %s22, 1
    %s24 = scalar_select %p23, 0, %s22
    %s25 = sadd.s32 1, %s16
    %s26 = scalar_select %p23, %s25, %s16
    %p27 = scmp.ge.s32.totalorder %s26, 2
    %s28 = scalar_select %p27, 0, %s26
    %s29 = ssub.s32 %s16, %s28
    %p30 = scmp.eq.s32.totalorder %s29, 0
    %s32 = sadd.s32 %s31, 1
    %s33 = scalar_select %p30, %s31, %s32
    %p36 = pneg %p30
    %p37 = scmp.eq.s32.totalorder %s9, 1
    %p38 = por %p36, %p37
    %p39 = scmp.ne.s32.totalorder %s31, %s34
    %p40 = scmp.eq.s32.totalorder %s9, 0
    %p41 = por %p39, %p40
    %p42 = scmp.ne.s32.totalorder %s31, %s34
    %p43 = scmp.eq.s32.totalorder %s14, 1
    %p44 = por %p42, %p43
    %p45 = scmp.ne.s32.totalorder %s34, %s35
    %p46 = scmp.eq.s32.totalorder %s14, 0
    %p47 = por %p45, %p46
    %p48 = scmp.ne.s32.totalorder %s34, %s35
    %p49 = scmp.eq.s32.totalorder %s15, 1
    %p50 = por %p48, %p49
    %p52 = scmp.ne.s32.totalorder %s35, %s51
    %p53 = scmp.eq.s32.totalorder %s15, 0
    %p54 = por %p52, %p53
    %s56 = sadd.s32 %s55, 1
    %p59 = scmp.eq.s32.totalorder %s9, 1
    %p60 = scmp.ne.s32.totalorder %s55, %s57
    %p61 = scmp.eq.s32.totalorder %s9, 0
    %p62 = por %p60, %p61
    %p63 = scmp.ne.s32.totalorder %s55, %s57
    %p64 = scmp.eq.s32.totalorder %s14, 1
    %p65 = por %p63, %p64
    %p66 = scmp.ne.s32.totalorder %s57, %s58
    %p67 = scmp.eq.s32.totalorder %s14, 0
    %p68 = por %p66, %p67
    %p69 = scmp.ne.s32.totalorder %s57, %s58
    %p70 = scmp.eq.s32.totalorder %s15, 1
    %p71 = por %p69, %p70
    %p73 = scmp.ne.s32.totalorder %s58, %s72
    %p74 = scmp.eq.s32.totalorder %s15, 0
    %p75 = por %p73, %p74
    %s77 = sadd.s32 %s76, 1
    %p80 = scmp.eq.s32.totalorder %s9, 1
    %p81 = scmp.ne.s32.totalorder %s76, %s78
    %p82 = scmp.eq.s32.totalorder %s9, 0
    %p83 = por %p81, %p82
    %p84 = scmp.ne.s32.totalorder %s76, %s78
    %p85 = scmp.eq.s32.totalorder %s14, 1
    %p86 = por %p84, %p85
    %p87 = scmp.ne.s32.totalorder %s78, %s79
    %p88 = scmp.eq.s32.totalorder %s14, 0
    %p89 = por %p87, %p88
    %p90 = scmp.ne.s32.totalorder %s78, %s79
    %p91 = scmp.eq.s32.totalorder %s15, 1
    %p92 = por %p90, %p91
    %p94 = scmp.ne.s32.totalorder %s79, %s93
    %p95 = scmp.eq.s32.totalorder %s15, 0
    %p96 = por %p94, %p95
    %s97 = ssub.s32 %s16, %s28
    %s98 = ssub.s32 %s17, %s24
    %s99 = sor.u32 %s97, %s98
    %p100 = scmp.eq.s32.totalorder %s99, 0
    %s102 = sadd.s32 %s101, 1
    %s103 = scalar_select %p100, %s101, %s102
    %p106 = pneg %p100
    %p107 = scmp.eq.s32.totalorder %s9, 1
    %p108 = por %p106, %p107
    %p109 = scmp.ne.s32.totalorder %s101, %s104
    %p110 = scmp.eq.s32.totalorder %s9, 0
    %p111 = por %p109, %p110
    %p112 = scmp.ne.s32.totalorder %s101, %s104
    %p113 = scmp.eq.s32.totalorder %s14, 1
    %p114 = por %p112, %p113
    %p115 = scmp.ne.s32.totalorder %s104, %s105
    %p116 = scmp.eq.s32.totalorder %s14, 0
    %p117 = por %p115, %p116
    %p118 = scmp.ne.s32.totalorder %s104, %s105
    %p119 = scmp.eq.s32.totalorder %s15, 1
    %p120 = por %p118, %p119
    %p122 = scmp.ne.s32.totalorder %s105, %s121
    %p123 = scmp.eq.s32.totalorder %s15, 0
    %p124 = por %p122, %p123
    %p125 = scmp.le.s32.totalorder 1, %s9
    %p126 = scmp.lt.s32.totalorder %s9, 3
    %p127 = pnand %p125, %p126
    %p128 = pneg %p127
    // Predicated region
    $region9: #{single_conv_forward.1} parent=5 // pred_check
      _
    $region10: #{single_conv_forward.1} parent=5 // pred_check_branch
      %130 = sbr.rel (%p127) target = $region12
    $region11: #{single_conv_forward.1} parent=5 // pred_region
      %s131 = ssub.s32 %s9, 1
      // Predicated region
      $region13: #{single_conv_forward.1} parent=11 // pred_check
        %p132 = pneg %p47
      $region14: #{single_conv_forward.1} parent=11 // pred_check_branch
        %134 = sbr.rel (%p132) target = $region16
      $region15: #{single_conv_forward.1} parent=11 // pred_region
        %p135 = scmp.lt.s32.totalorder %s18, 1
        %s136 = scalar_select %p135, %s18, 1
        %s137 = smul.addr %s136, 57
        %s138 = smul.addr %s137, 8
        %s139 = scalar_lea.vmem %s0, %s138
      $region16: #{single_conv_forward.1} parent=11 // pred_fallthru
        _
      // Predicated region
      $region17: #{single_conv_forward.1} parent=11 // pred_check
        %p140 = pneg %p68
      $region18: #{single_conv_forward.1} parent=11 // pred_check_branch
        %142 = sbr.rel (%p140) target = $region20
      $region19: #{single_conv_forward.1} parent=11 // pred_region
        _
      $region20: #{single_conv_forward.1} parent=11 // pred_fallthru
        _
      // Predicated region
      $region21: #{single_conv_forward.1} parent=11 // pred_check
        %p143 = pneg %p89
      $region22: #{single_conv_forward.1} parent=11 // pred_check_branch
        %145 = sbr.rel (%p143) target = $region24
      $region23: #{single_conv_forward.1} parent=11 // pred_region
        _
      $region24: #{single_conv_forward.1} parent=11 // pred_fallthru
        _
    $region12: #{single_conv_forward.1} parent=5 // pred_fallthru
      _
    %p146 = scmp.lt.s32.totalorder %s9, 2
    // Predicated region
    $region25: #{single_conv_forward.1} parent=5 // pred_check
      %p147 = pneg %p146
    $region26: #{single_conv_forward.1} parent=5 // pred_check_branch
      %149 = sbr.rel (%p147) target = $region28
    $region27: #{single_conv_forward.1} parent=5 // pred_region
      _
    $region28: #{single_conv_forward.1} parent=5 // pred_fallthru
      _
    %p150 = scmp.le.s32.totalorder 1, %s9
    %p151 = scmp.lt.s32.totalorder %s9, 3
    %p152 = pnand %p150, %p151
    %p153 = pneg %p152
    // Predicated region
    $region29: #{single_conv_forward.1} parent=5 // pred_check
      _
    $region30: #{single_conv_forward.1} parent=5 // pred_check_branch
      %155 = sbr.rel (%p152) target = $region32
    $region31: #{single_conv_forward.1} parent=5 // pred_region
      %s156 = ssub.s32 %s9, 1
      %p157 = scmp.lt.s32.totalorder %s18, 1
      %s158 = scalar_select %p157, %s18, 1
      %s159 = smul.addr %s158, 57
      %s160 = smul.addr %s159, 8
      %s161 = scalar_lea.vmem %s0, %s160
      %p162 = pneg %p47
      %p163 = pneg %p44
      %p164 = pneg %p68
      %p165 = pneg %p65
      %p166 = pneg %p89
      %p167 = pneg %p86
      %p168 = pneg %p117
      %p169 = pneg %p114
      %s170 = smul.u32 48, %s19
      %p171 = scmp.lt.s32.totalorder %s18, 1
      %s172 = scalar_select %p171, %s18, 1
      %p173 = scmp.lt.s32.totalorder %s170, 47
      %s174 = scalar_select %p173, %s170, 47
      %s175 = smul.addr %s172, 48
      %s176 = sadd.s32 %s174, %s175
      %s177 = smul.addr %s176, 8
      %s178 = scalar_lea.vmem %s3, %s177
      %p179 = scmp.lt.s32.totalorder %s18, 1
      %s180 = scalar_select %p179, %s18, 1
      %s181 = smul.addr %s180, 57
      %s182 = smul.addr %s181, 8
      %s183 = scalar_lea.vmem %s0, %s182
      %s184 = smul.u32 48, %s19
      %p185 = scmp.lt.s32.totalorder %s18, 1
      %s186 = scalar_select %p185, %s18, 1
      %p187 = scmp.lt.s32.totalorder %s184, 47
      %s188 = scalar_select %p187, %s184, 47
      %s189 = smul.addr %s186, 48
      %s190 = sadd.s32 %s188, %s189
      %s191 = smul.addr %s190, 8
      %s192 = scalar_lea.vmem %s3, %s191
      %s193 = smul.u32 48, %s19
      %s194 = smul.u32 %s19, 384
      %s195 = scalar_lea.vmem %s183, %s194
      %v196 = vld [vmem:[%s195] sm:$0xff]
      %v197 = vld [vmem:[%s195 + $0x8] sm:$0xff]
      %v198 = vld [vmem:[%s195 + $0x10] sm:$0xff]
      %v199 = vld [vmem:[%s195 + $0x18] sm:$0xff]
      %v200 = vld [vmem:[%s195 + $0x20] sm:$0xff]
      %v201 = vld [vmem:[%s195 + $0x28] sm:$0xff]
      %v202 = vld [vmem:[%s195 + $0x30] sm:$0xff]
      %v203 = vld [vmem:[%s195 + $0x38] sm:$0xff]
      %v204 = vld [vmem:[%s195 + $0x40] sm:$0xff]
      %v205 = vld [vmem:[%s195 + $0x48] sm:$0xff]
      %v206 = vld [vmem:[%s195 + $0x50] sm:$0xff]
      %v207 = vld [vmem:[%s195 + $0x58] sm:$0xff]
      %v208 = vld [vmem:[%s195 + $0x60] sm:$0xff]
      %v209 = vld [vmem:[%s195 + $0x68] sm:$0xff]
      %v210 = vld [vmem:[%s195 + $0x70] sm:$0xff]
      %v211 = vld [vmem:[%s195 + $0x78] sm:$0xff]
      %v212 = vld [vmem:[%s195 + $0x80] sm:$0xff]
      %v213 = vld [vmem:[%s195 + $0x88] sm:$0xff]
      %v214 = vld [vmem:[%s195 + $0x90] sm:$0xff]
      %v215 = vld [vmem:[%s195 + $0x98] sm:$0xff]
      %v216 = vld [vmem:[%s195 + $0xa0] sm:$0xff]
      %v217 = vld [vmem:[%s195 + $0xa8] sm:$0xff]
      %v218 = vld [vmem:[%s195 + $0xb0] sm:$0xff]
      %v219 = vld [vmem:[%s195 + $0xb8] sm:$0xff]
      %v220 = vld [vmem:[%s195 + $0xc0] sm:$0xff]
      %v221 = vld [vmem:[%s195 + $0xc8] sm:$0xff]
      %v222 = vld [vmem:[%s195 + $0xd0] sm:$0xff]
      %v223 = vld [vmem:[%s195 + $0xd8] sm:$0xff]
      %v224 = vld [vmem:[%s195 + $0xe0] sm:$0xff]
      %v225 = vld [vmem:[%s195 + $0xe8] sm:$0xff]
      %v226 = vld [vmem:[%s195 + $0xf0] sm:$0xff]
      %v227 = vld [vmem:[%s195 + $0xf8] sm:$0xff]
      %v228 = vld [vmem:[%s195 + $0x100] sm:$0xff]
      %v229 = vld [vmem:[%s195 + $0x108] sm:$0xff]
      %v230 = vld [vmem:[%s195 + $0x110] sm:$0xff]
      %v231 = vld [vmem:[%s195 + $0x118] sm:$0xff]
      %v232 = vld [vmem:[%s195 + $0x120] sm:$0xff]
      %v233 = vld [vmem:[%s195 + $0x128] sm:$0xff]
      %v234 = vld [vmem:[%s195 + $0x130] sm:$0xff]
      %v235 = vld [vmem:[%s195 + $0x138] sm:$0xff]
      %v236 = vld [vmem:[%s195 + $0x140] sm:$0xff]
      %v237 = vld [vmem:[%s195 + $0x148] sm:$0xff]
      %v238 = vld [vmem:[%s195 + $0x150] sm:$0xff]
      %v239 = vld [vmem:[%s195 + $0x158] sm:$0xff]
      %v240 = vld [vmem:[%s195 + $0x160] sm:$0xff]
      %v241 = vld [vmem:[%s195 + $0x168] sm:$0xff]
      %v242 = vld [vmem:[%s195 + $0x170] sm:$0xff]
      %v243 = vld [vmem:[%s195 + $0x178] sm:$0xff]
      %v244 = vld [vmem:[%s1] sm:$0xff]
      %v245 = vld [vmem:[%s1 + $0x8] sm:$0xf]
      %s246 = sadd.s32 %s194, 24
      %s247 = scalar_lea.vmem %s183, %s246
      %v248 = vld [vmem:[%s247] sm:$0xff]
      %v249 = vld [vmem:[%s247 + $0x8] sm:$0xff]
      %v250 = vld [vmem:[%s247 + $0x10] sm:$0xff]
      %v251 = vld [vmem:[%s247 + $0x18] sm:$0xff]
      %v252 = vld [vmem:[%s247 + $0x20] sm:$0xff]
      %v253 = vld [vmem:[%s247 + $0x28] sm:$0xff]
      %v254 = vld [vmem:[%s247 + $0x30] sm:$0xff]
      %v255 = vld [vmem:[%s247 + $0x38] sm:$0xff]
      %v256 = vld [vmem:[%s247 + $0x40] sm:$0xff]
      %v257 = vld [vmem:[%s247 + $0x48] sm:$0xff]
      %v258 = vld [vmem:[%s247 + $0x50] sm:$0xff]
      %v259 = vld [vmem:[%s247 + $0x58] sm:$0xff]
      %v260 = vld [vmem:[%s247 + $0x60] sm:$0xff]
      %v261 = vld [vmem:[%s247 + $0x68] sm:$0xff]
      %v262 = vld [vmem:[%s247 + $0x70] sm:$0xff]
      %v263 = vld [vmem:[%s247 + $0x78] sm:$0xff]
      %v264 = vld [vmem:[%s247 + $0x80] sm:$0xff]
      %v265 = vld [vmem:[%s247 + $0x88] sm:$0xff]
      %v266 = vld [vmem:[%s247 + $0x90] sm:$0xff]
      %v267 = vld [vmem:[%s247 + $0x98] sm:$0xff]
      %v268 = vld [vmem:[%s247 + $0xa0] sm:$0xff]
      %v269 = vld [vmem:[%s247 + $0xa8] sm:$0xff]
      %v270 = vld [vmem:[%s247 + $0xb0] sm:$0xff]
      %v271 = vld [vmem:[%s247 + $0xb8] sm:$0xff]
      %v272 = vld [vmem:[%s247 + $0xc0] sm:$0xff]
      %v273 = vld [vmem:[%s247 + $0xc8] sm:$0xff]
      %v274 = vld [vmem:[%s247 + $0xd0] sm:$0xff]
      %v275 = vld [vmem:[%s247 + $0xd8] sm:$0xff]
      %v276 = vld [vmem:[%s247 + $0xe0] sm:$0xff]
      %v277 = vld [vmem:[%s247 + $0xe8] sm:$0xff]
      %v278 = vld [vmem:[%s247 + $0xf0] sm:$0xff]
      %v279 = vld [vmem:[%s247 + $0xf8] sm:$0xff]
      %v280 = vld [vmem:[%s247 + $0x100] sm:$0xff]
      %v281 = vld [vmem:[%s247 + $0x108] sm:$0xff]
      %v282 = vld [vmem:[%s247 + $0x110] sm:$0xff]
      %v283 = vld [vmem:[%s247 + $0x118] sm:$0xff]
      %v284 = vld [vmem:[%s247 + $0x120] sm:$0xff]
      %v285 = vld [vmem:[%s247 + $0x128] sm:$0xff]
      %v286 = vld [vmem:[%s247 + $0x130] sm:$0xff]
      %v287 = vld [vmem:[%s247 + $0x138] sm:$0xff]
      %v288 = vld [vmem:[%s247 + $0x140] sm:$0xff]
      %v289 = vld [vmem:[%s247 + $0x148] sm:$0xff]
      %v290 = vld [vmem:[%s247 + $0x150] sm:$0xff]
      %v291 = vld [vmem:[%s247 + $0x158] sm:$0xff]
      %v292 = vld [vmem:[%s247 + $0x160] sm:$0xff]
      %v293 = vld [vmem:[%s247 + $0x168] sm:$0xff]
      %v294 = vld [vmem:[%s247 + $0x170] sm:$0xff]
      %v295 = vld [vmem:[%s247 + $0x178] sm:$0xff]
      %s296 = scalar_lea.vmem %s1, 16
      %v297 = vld [vmem:[%s296] sm:$0xff]
      %v298 = vld [vmem:[%s296 + $0x8] sm:$0xf]
      %vm299 = vcmask 97280
      %v301 = vsel %vm299, %v248, 0
      %v304 = vsel %vm299, %v249, 0
      %v307 = vsel %vm299, %v250, 0
      %v310 = vsel %vm299, %v251, 0
      %v313 = vsel %vm299, %v252, 0
      %v316 = vsel %vm299, %v253, 0
      %v319 = vsel %vm299, %v254, 0
      %v322 = vsel %vm299, %v255, 0
      %v325 = vsel %vm299, %v256, 0
      %v328 = vsel %vm299, %v257, 0
      %v331 = vsel %vm299, %v258, 0
      %v334 = vsel %vm299, %v259, 0
      %v337 = vsel %vm299, %v260, 0
      %v340 = vsel %vm299, %v261, 0
      %v343 = vsel %vm299, %v262, 0
      %v346 = vsel %vm299, %v263, 0
      %v349 = vsel %vm299, %v264, 0
      %v352 = vsel %vm299, %v265, 0
      %v355 = vsel %vm299, %v266, 0
      %v358 = vsel %vm299, %v267, 0
      %v361 = vsel %vm299, %v268, 0
      %v364 = vsel %vm299, %v269, 0
      %v367 = vsel %vm299, %v270, 0
      %v370 = vsel %vm299, %v271, 0
      %v373 = vsel %vm299, %v272, 0
      %v376 = vsel %vm299, %v273, 0
      %v379 = vsel %vm299, %v274, 0
      %v382 = vsel %vm299, %v275, 0
      %v385 = vsel %vm299, %v276, 0
      %v388 = vsel %vm299, %v277, 0
      %v391 = vsel %vm299, %v278, 0
      %v394 = vsel %vm299, %v279, 0
      %v397 = vsel %vm299, %v280, 0
      %v400 = vsel %vm299, %v281, 0
      %v403 = vsel %vm299, %v282, 0
      %v406 = vsel %vm299, %v283, 0
      %v409 = vsel %vm299, %v284, 0
      %v412 = vsel %vm299, %v285, 0
      %v415 = vsel %vm299, %v286, 0
      %v418 = vsel %vm299, %v287, 0
      %v421 = vsel %vm299, %v288, 0
      %v424 = vsel %vm299, %v289, 0
      %v427 = vsel %vm299, %v290, 0
      %v430 = vsel %vm299, %v291, 0
      %v433 = vsel %vm299, %v292, 0
      %v436 = vsel %vm299, %v293, 0
      %v439 = vsel %vm299, %v294, 0
      %v442 = vsel %vm299, %v295, 0
      %vm444 = vcmask 1043456
      %v446 = vsel %vm444, %v298, 0
      %448 = vmatprep.subr.mxu0 0.0
      %449 = vmatpush1.msra.mxu0 %v297
      %450 = vmatprep.subr.mxu0 0.0
      %451 = vmatpush1.msra.mxu0 %v446
      %452 = vmatprep.subr.mxu0 0.0
      %453 = vmatpush1.msra.mxu0 0.0
      %454 = vmatprep.subr.mxu0 0.0
      %455 = vmatpush1.msra.mxu0 0.0
      %456 = vmatprep.subr.mxu0 0.0
      %457 = vmatpush1.msra.mxu0 0.0
      %458 = vmatprep.subr.mxu0 0.0
      %459 = vmatpush1.msra.mxu0 0.0
      %460 = vmatprep.subr.mxu0 0.0
      %461 = vmatpush1.msra.mxu0 0.0
      %462 = vmatprep.subr.mxu0 0.0
      %463 = vmatpush1.msra.mxu0 0.0
      %464 = vmatprep.subr.mxu0 0.0
      %465 = vmatpush1.msra.mxu0 0.0
      %466 = vmatprep.subr.mxu0 0.0
      %467 = vmatpush1.msra.mxu0 0.0
      %468 = vmatprep.subr.mxu0 0.0
      %469 = vmatpush1.msra.mxu0 0.0
      %470 = vmatprep.subr.mxu0 0.0
      %471 = vmatpush1.msra.mxu0 0.0
      %472 = vmatprep.subr.mxu0 0.0
      %473 = vmatpush1.msra.mxu0 0.0
      %474 = vmatprep.subr.mxu0 0.0
      %475 = vmatpush1.msra.mxu0 0.0
      %476 = vmatprep.subr.mxu0 0.0
      %477 = vmatpush1.msra.mxu0 0.0
      %478 = vmatprep.subr.mxu0 0.0
      %479 = vmatpush1.msra.mxu0 0.0
      %480 = vmatprep.subr.mxu0 0.0
      %481 = vmatpush1.msra.mxu0 0.0
      %482 = vmatprep.subr.mxu0 0.0
      %483 = vmatpush1.msra.mxu0 0.0
      %484 = vmatprep.subr.mxu0 0.0
      %485 = vmatpush1.msra.mxu0 0.0
      %486 = vmatprep.subr.mxu0 0.0
      %487 = vmatpush1.msra.mxu0 0.0
      %488 = vmatprep.subr.mxu0 0.0
      %489 = vmatpush1.msra.mxu0 0.0
      %490 = vmatprep.subr.mxu0 0.0
      %491 = vmatpush1.msra.mxu0 0.0
      %492 = vmatprep.subr.mxu0 0.0
      %493 = vmatpush1.msra.mxu0 0.0
      %494 = vmatprep.subr.mxu0 0.0
      %495 = vmatpush1.msra.mxu0 0.0
      %496 = vmatprep.subr.mxu0 0.0
      %497 = vmatpush1.msra.mxu0 0.0
      %498 = vmatprep.subr.mxu0 0.0
      %499 = vmatpush1.msra.mxu0 0.0
      %500 = vmatprep.subr.mxu0 0.0
      %501 = vmatpush1.msra.mxu0 0.0
      %502 = vmatprep.subr.mxu0 0.0
      %503 = vmatpush1.msra.mxu0 0.0
      %504 = vmatprep.subr.mxu0 0.0
      %505 = vmatpush1.msra.mxu0 0.0
      %506 = vmatprep.subr.mxu0 0.0
      %507 = vmatpush1.msra.mxu0 0.0
      %508 = vmatprep.subr.mxu0 0.0
      %509 = vmatpush1.msra.mxu0 0.0
      %510 = vmatprep.subr.mxu0 0.0
      %511 = vmatpush1.msra.mxu0 0.0
      %512 = vmatprep.mubr.f32.mxu0 0.0
      %513 = vmatmul.mubr.f32.gmra.mrb[0].mxu0 %v301
      %v514 = vpop.f32.mrb[0].mxu0
      %v515 = vadd.f32 0.0, %v514
      %v516 = vpop.f32.mrb[0].mxu0
      %517 = vmatprep.mubr.f32.mxu0 0.0
      %518 = vmatmul.mubr.f32.gmra.mrb[0].mxu0 %v304
      %v519 = vpop.f32.mrb[0].mxu0
      %v520 = vadd.f32 0.0, %v519
      %v521 = vpop.f32.mrb[0].mxu0
      %522 = vmatprep.mubr.f32.mxu0 0.0
      %523 = vmatmul.mubr.f32.gmra.mrb[0].mxu0 %v307
      %v524 = vpop.f32.mrb[0].mxu0
      %v525 = vadd.f32 0.0, %v524
      %v526 = vpop.f32.mrb[0].mxu0
      %527 = vmatprep.mubr.f32.mxu0 0.0
      %528 = vmatmul.mubr.f32.gmra.mrb[0].mxu0 %v310
      %v529 = vpop.f32.mrb[0].mxu0
      %v530 = vadd.f32 0.0, %v529
      %v531 = vpop.f32.mrb[0].mxu0
      %532 = vmatprep.mubr.f32.mxu0 0.0
      %533 = vmatmul.mubr.f32.gmra.mrb[0].mxu0 %v313
      %v534 = vpop.f32.mrb[0].mxu0
      %v535 = vadd.f32 0.0, %v534
      %v536 = vpop.f32.mrb[0].mxu0
      %537 = vmatprep.mubr.f32.mxu0 0.0
      %538 = vmatmul.mubr.f32.gmra.mrb[0].mxu0 %v316
      %v539 = vpop.f32.mrb[0].mxu0
      %v540 = vadd.f32 0.0, %v539
      %v541 = vpop.f32.mrb[0].mxu0
      %542 = vmatprep.mubr.f32.mxu0 0.0
      %543 = vmatmul.mubr.f32.gmra.mrb[0].mxu0 %v319
      %v544 = vpop.f32.mrb[0].mxu0
      %v545 = vadd.f32 0.0, %v544
      %v546 = vpop.f32.mrb[0].mxu0
      %547 = vmatprep.mubr.f32.mxu0 0.0
      %548 = vmatmul.mubr.f32.gmra.mrb[0].mxu0 %v322
      %v549 = vpop.f32.mrb[0].mxu0
      %v550 = vadd.f32 0.0, %v549
      %v551 = vpop.f32.mrb[0].mxu0
      %552 = vmatprep.mubr.f32.mxu0 0.0
      %553 = vmatmul.mubr.f32.gmra.mrb[0].mxu0 %v325
      %v554 = vpop.f32.mrb[0].mxu0
      %v555 = vadd.f32 0.0, %v554
      %v556 = vpop.f32.mrb[0].mxu0
      %557 = vmatprep.mubr.f32.mxu0 0.0
      %558 = vmatmul.mubr.f32.gmra.mrb[0].mxu0 %v328
      %v559 = vpop.f32.mrb[0].mxu0
      %v560 = vadd.f32 0.0, %v559
      %v561 = vpop.f32.mrb[0].mxu0
      %562 = vmatprep.mubr.f32.mxu0 0.0
      %563 = vmatmul.mubr.f32.gmra.mrb[0].mxu0 %v331
      %v564 = vpop.f32.mrb[0].mxu0
      %v565 = vadd.f32 0.0, %v564
      %v566 = vpop.f32.mrb[0].mxu0
      %567 = vmatprep.mubr.f32.mxu0 0.0
      %568 = vmatmul.mubr.f32.gmra.mrb[0].mxu0 %v334
      %v569 = vpop.f32.mrb[0].mxu0
      %v570 = vadd.f32 0.0, %v569
      %v571 = vpop.f32.mrb[0].mxu0
      %572 = vmatprep.mubr.f32.mxu0 0.0
      %573 = vmatmul.mubr.f32.gmra.mrb[0].mxu0 %v337
      %v574 = vpop.f32.mrb[0].mxu0
      %v575 = vadd.f32 0.0, %v574
      %v576 = vpop.f32.mrb[0].mxu0
      %577 = vmatprep.mubr.f32.mxu0 0.0
      %578 = vmatmul.mubr.f32.gmra.mrb[0].mxu0 %v340
      %v579 = vpop.f32.mrb[0].mxu0
      %v580 = vadd.f32 0.0, %v579
      %v581 = vpop.f32.mrb[0].mxu0
      %582 = vmatprep.mubr.f32.mxu0 0.0
      %583 = vmatmul.mubr.f32.gmra.mrb[0].mxu0 %v343
      %v584 = vpop.f32.mrb[0].mxu0
      %v585 = vadd.f32 0.0, %v584
      %v586 = vpop.f32.mrb[0].mxu0
      %587 = vmatprep.mubr.f32.mxu0 0.0
      %588 = vmatmul.mubr.f32.gmra.mrb[0].mxu0 %v346
      %v589 = vpop.f32.mrb[0].mxu0
      %v590 = vadd.f32 0.0, %v589
      %v591 = vpop.f32.mrb[0].mxu0
      %592 = vmatprep.mubr.f32.mxu0 0.0
      %593 = vmatmul.mubr.f32.gmra.mrb[0].mxu0 %v349
      %v594 = vpop.f32.mrb[0].mxu0
      %v595 = vadd.f32 0.0, %v594
      %v596 = vpop.f32.mrb[0].mxu0
      %597 = vmatprep.mubr.f32.mxu0 0.0
      %598 = vmatmul.mubr.f32.gmra.mrb[0].mxu0 %v352
      %v599 = vpop.f32.mrb[0].mxu0
      %v600 = vadd.f32 0.0, %v599
      %v601 = vpop.f32.mrb[0].mxu0
      %602 = vmatprep.mubr.f32.mxu0 0.0
      %603 = vmatmul.mubr.f32.gmra.mrb[0].mxu0 %v355
      %v604 = vpop.f32.mrb[0].mxu0
      %v605 = vadd.f32 0.0, %v604
      %v606 = vpop.f32.mrb[0].mxu0
      %607 = vmatprep.mubr.f32.mxu0 0.0
      %608 = vmatmul.mubr.f32.gmra.mrb[0].mxu0 %v358
      %v609 = vpop.f32.mrb[0].mxu0
      %v610 = vadd.f32 0.0, %v609
      %v611 = vpop.f32.mrb[0].mxu0
      %612 = vmatprep.mubr.f32.mxu0 0.0
      %613 = vmatmul.mubr.f32.gmra.mrb[0].mxu0 %v361
      %v614 = vpop.f32.mrb[0].mxu0
      %v615 = vadd.f32 0.0, %v614
      %v616 = vpop.f32.mrb[0].mxu0
      %617 = vmatprep.mubr.f32.mxu0 0.0
      %618 = vmatmul.mubr.f32.gmra.mrb[0].mxu0 %v364
      %v619 = vpop.f32.mrb[0].mxu0
      %v620 = vadd.f32 0.0, %v619
      %v621 = vpop.f32.mrb[0].mxu0
      %622 = vmatprep.mubr.f32.mxu0 0.0
      %623 = vmatmul.mubr.f32.gmra.mrb[0].mxu0 %v367
      %v624 = vpop.f32.mrb[0].mxu0
      %v625 = vadd.f32 0.0, %v624
      %v626 = vpop.f32.mrb[0].mxu0
      %627 = vmatprep.mubr.f32.mxu0 0.0
      %628 = vmatmul.mubr.f32.gmra.mrb[0].mxu0 %v370
      %v629 = vpop.f32.mrb[0].mxu0
      %v630 = vadd.f32 0.0, %v629
      %v631 = vpop.f32.mrb[0].mxu0
      %632 = vmatprep.mubr.f32.mxu0 0.0
      %633 = vmatmul.mubr.f32.gmra.mrb[0].mxu0 %v373
      %v634 = vpop.f32.mrb[0].mxu0
      %v635 = vadd.f32 0.0, %v634
      %v636 = vpop.f32.mrb[0].mxu0
      %637 = vmatprep.mubr.f32.mxu0 0.0
      %638 = vmatmul.mubr.f32.gmra.mrb[0].mxu0 %v376
      %v639 = vpop.f32.mrb[0].mxu0
      %v640 = vadd.f32 0.0, %v639
      %v641 = vpop.f32.mrb[0].mxu0
      %642 = vmatprep.mubr.f32.mxu0 0.0
      %643 = vmatmul.mubr.f32.gmra.mrb[0].mxu0 %v379
      %v644 = vpop.f32.mrb[0].mxu0
      %v645 = vadd.f32 0.0, %v644
      %v646 = vpop.f32.mrb[0].mxu0
      %647 = vmatprep.mubr.f32.mxu0 0.0
      %648 = vmatmul.mubr.f32.gmra.mrb[0].mxu0 %v382
      %v649 = vpop.f32.mrb[0].mxu0
      %v650 = vadd.f32 0.0, %v649
      %v651 = vpop.f32.mrb[0].mxu0
      %652 = vmatprep.mubr.f32.mxu0 0.0
      %653 = vmatmul.mubr.f32.gmra.mrb[0].mxu0 %v385
      %v654 = vpop.f32.mrb[0].mxu0
      %v655 = vadd.f32 0.0, %v654
      %v656 = vpop.f32.mrb[0].mxu0
      %657 = vmatprep.mubr.f32.mxu0 0.0
      %658 = vmatmul.mubr.f32.gmra.mrb[0].mxu0 %v388
      %v659 = vpop.f32.mrb[0].mxu0
      %v660 = vadd.f32 0.0, %v659
      %v661 = vpop.f32.mrb[0].mxu0
      %662 = vmatprep.mubr.f32.mxu0 0.0
      %663 = vmatmul.mubr.f32.gmra.mrb[0].mxu0 %v391
      %v664 = vpop.f32.mrb[0].mxu0
      %v665 = vadd.f32 0.0, %v664
      %v666 = vpop.f32.mrb[0].mxu0
      %667 = vmatprep.mubr.f32.mxu0 0.0
      %668 = vmatmul.mubr.f32.gmra.mrb[0].mxu0 %v394
      %v669 = vpop.f32.mrb[0].mxu0
      %v670 = vadd.f32 0.0, %v669
      %v671 = vpop.f32.mrb[0].mxu0
      %672 = vmatprep.mubr.f32.mxu0 0.0
      %673 = vmatmul.mubr.f32.gmra.mrb[0].mxu0 %v397
      %v674 = vpop.f32.mrb[0].mxu0
      %v675 = vadd.f32 0.0, %v674
      %v676 = vpop.f32.mrb[0].mxu0
      %677 = vmatprep.mubr.f32.mxu0 0.0
      %678 = vmatmul.mubr.f32.gmra.mrb[0].mxu0 %v400
      %v679 = vpop.f32.mrb[0].mxu0
      %v680 = vadd.f32 0.0, %v679
      %v681 = vpop.f32.mrb[0].mxu0
      %682 = vmatprep.mubr.f32.mxu0 0.0
      %683 = vmatmul.mubr.f32.gmra.mrb[0].mxu0 %v403
      %v684 = vpop.f32.mrb[0].mxu0
      %v685 = vadd.f32 0.0, %v684
      %v686 = vpop.f32.mrb[0].mxu0
      %687 = vmatprep.mubr.f32.mxu0 0.0
      %688 = vmatmul.mubr.f32.gmra.mrb[0].mxu0 %v406
      %v689 = vpop.f32.mrb[0].mxu0
      %v690 = vadd.f32 0.0, %v689
      %v691 = vpop.f32.mrb[0].mxu0
      %692 = vmatprep.mubr.f32.mxu0 0.0
      %693 = vmatmul.mubr.f32.gmra.mrb[0].mxu0 %v409
      %v694 = vpop.f32.mrb[0].mxu0
      %v695 = vadd.f32 0.0, %v694
      %v696 = vpop.f32.mrb[0].mxu0
      %697 = vmatprep.mubr.f32.mxu0 0.0
      %698 = vmatmul.mubr.f32.gmra.mrb[0].mxu0 %v412
      %v699 = vpop.f32.mrb[0].mxu0
      %v700 = vadd.f32 0.0, %v699
      %v701 = vpop.f32.mrb[0].mxu0
      %702 = vmatprep.mubr.f32.mxu0 0.0
      %703 = vmatmul.mubr.f32.gmra.mrb[0].mxu0 %v415
      %v704 = vpop.f32.mrb[0].mxu0
      %v705 = vadd.f32 0.0, %v704
      %v706 = vpop.f32.mrb[0].mxu0
      %707 = vmatprep.mubr.f32.mxu0 0.0
      %708 = vmatmul.mubr.f32.gmra.mrb[0].mxu0 %v418
      %v709 = vpop.f32.mrb[0].mxu0
      %v710 = vadd.f32 0.0, %v709
      %v711 = vpop.f32.mrb[0].mxu0
      %712 = vmatprep.mubr.f32.mxu0 0.0
      %713 = vmatmul.mubr.f32.gmra.mrb[0].mxu0 %v421
      %v714 = vpop.f32.mrb[0].mxu0
      %v715 = vadd.f32 0.0, %v714
      %v716 = vpop.f32.mrb[0].mxu0
      %717 = vmatprep.mubr.f32.mxu0 0.0
      %718 = vmatmul.mubr.f32.gmra.mrb[0].mxu0 %v424
      %v719 = vpop.f32.mrb[0].mxu0
      %v720 = vadd.f32 0.0, %v719
      %v721 = vpop.f32.mrb[0].mxu0
      %722 = vmatprep.mubr.f32.mxu0 0.0
      %723 = vmatmul.mubr.f32.gmra.mrb[0].mxu0 %v427
      %v724 = vpop.f32.mrb[0].mxu0
      %v725 = vadd.f32 0.0, %v724
      %v726 = vpop.f32.mrb[0].mxu0
      %727 = vmatprep.mubr.f32.mxu0 0.0
      %728 = vmatmul.mubr.f32.gmra.mrb[0].mxu0 %v430
      %v729 = vpop.f32.mrb[0].mxu0
      %v730 = vadd.f32 0.0, %v729
      %v731 = vpop.f32.mrb[0].mxu0
      %732 = vmatprep.mubr.f32.mxu0 0.0
      %733 = vmatmul.mubr.f32.gmra.mrb[0].mxu0 %v433
      %v734 = vpop.f32.mrb[0].mxu0
      %v735 = vadd.f32 0.0, %v734
      %v736 = vpop.f32.mrb[0].mxu0
      %737 = vmatprep.mubr.f32.mxu0 0.0
      %738 = vmatmul.mubr.f32.gmra.mrb[0].mxu0 %v436
      %v739 = vpop.f32.mrb[0].mxu0
      %v740 = vadd.f32 0.0, %v739
      %v741 = vpop.f32.mrb[0].mxu0
      %742 = vmatprep.mubr.f32.mxu0 0.0
      %743 = vmatmul.mubr.f32.gmra.mrb[0].mxu0 %v439
      %v744 = vpop.f32.mrb[0].mxu0
      %v745 = vadd.f32 0.0, %v744
      %v746 = vpop.f32.mrb[0].mxu0
      %747 = vmatprep.mubr.f32.mxu0 0.0
      %748 = vmatmul.mubr.f32.gmra.mrb[0].mxu0 %v442
      %v749 = vpop.f32.mrb[0].mxu0
      %v750 = vadd.f32 0.0, %v749
      %v751 = vpop.f32.mrb[0].mxu0
      %752 = vdwg.mxu0
      %v754 = vsel %vm299, %v196, 0
      %v757 = vsel %vm299, %v197, 0
      %v760 = vsel %vm299, %v198, 0
      %v763 = vsel %vm299, %v199, 0
      %v766 = vsel %vm299, %v200, 0
      %v769 = vsel %vm299, %v201, 0
      %v772 = vsel %vm299, %v202, 0
      %v775 = vsel %vm299, %v203, 0
      %v778 = vsel %vm299, %v204, 0
      %v781 = vsel %vm299, %v205, 0
      %v784 = vsel %vm299, %v206, 0
      %v787 = vsel %vm299, %v207, 0
      %v790 = vsel %vm299, %v208, 0
      %v793 = vsel %vm299, %v209, 0
      %v796 = vsel %vm299, %v210, 0
      %v799 = vsel %vm299, %v211, 0
      %v802 = vsel %vm299, %v212, 0
      %v805 = vsel %vm299, %v213, 0
      %v808 = vsel %vm299, %v214, 0
      %v811 = vsel %vm299, %v215, 0
      %v814 = vsel %vm299, %v216, 0
      %v817 = vsel %vm299, %v217, 0
      %v820 = vsel %vm299, %v218, 0
      %v823 = vsel %vm299, %v219, 0
      %v826 = vsel %vm299, %v220, 0
      %v829 = vsel %vm299, %v221, 0
      %v832 = vsel %vm299, %v222, 0
      %v835 = vsel %vm299, %v223, 0
      %v838 = vsel %vm299, %v224, 0
      %v841 = vsel %vm299, %v225, 0
      %v844 = vsel %vm299, %v226, 0
      %v847 = vsel %vm299, %v227, 0
      %v850 = vsel %vm299, %v228, 0
      %v853 = vsel %vm299, %v229, 0
      %v856 = vsel %vm299, %v230, 0
      %v859 = vsel %vm299, %v231, 0
      %v862 = vsel %vm299, %v232, 0
      %v865 = vsel %vm299, %v233, 0
      %v868 = vsel %vm299, %v234, 0
      %v871 = vsel %vm299, %v235, 0
      %v874 = vsel %vm299, %v236, 0
      %v877 = vsel %vm299, %v237, 0
      %v880 = vsel %vm299, %v238, 0
      %v883 = vsel %vm299, %v239, 0
      %v886 = vsel %vm299, %v240, 0
      %v889 = vsel %vm299, %v241, 0
      %v892 = vsel %vm299, %v242, 0
      %v895 = vsel %vm299, %v243, 0
      %v898 = vsel %vm444, %v245, 0
      %900 = vmatprep.subr.mxu0 0.0
      %901 = vmatpush1.msra.mxu0 %v244
      %902 = vmatprep.subr.mxu0 0.0
      %903 = vmatpush1.msra.mxu0 %v898
      %904 = vmatprep.subr.mxu0 0.0
      %905 = vmatpush1.msra.mxu0 0.0
      %906 = vmatprep.subr.mxu0 0.0
      %907 = vmatpush1.msra.mxu0 0.0
      %908 = vmatprep.subr.mxu0 0.0
      %909 = vmatpush1.msra.mxu0 0.0
      %910 = vmatprep.subr.mxu0 0.0
      %911 = vmatpush1.msra.mxu0 0.0
      %912 = vmatprep.subr.mxu0 0.0
      %913 = vmatpush1.msra.mxu0 0.0
      %914 = vmatprep.subr.mxu0 0.0
      %915 = vmatpush1.msra.mxu0 0.0
      %916 = vmatprep.subr.mxu0 0.0
      %917 = vmatpush1.msra.mxu0 0.0
      %918 = vmatprep.subr.mxu0 0.0
      %919 = vmatpush1.msra.mxu0 0.0
      %920 = vmatprep.subr.mxu0 0.0
      %921 = vmatpush1.msra.mxu0 0.0
      %922 = vmatprep.subr.mxu0 0.0
      %923 = vmatpush1.msra.mxu0 0.0
      %924 = vmatprep.subr.mxu0 0.0
      %925 = vmatpush1.msra.mxu0 0.0
      %926 = vmatprep.subr.mxu0 0.0
      %927 = vmatpush1.msra.mxu0 0.0
      %928 = vmatprep.subr.mxu0 0.0
      %929 = vmatpush1.msra.mxu0 0.0
      %930 = vmatprep.subr.mxu0 0.0
      %931 = vmatpush1.msra.mxu0 0.0
      %932 = vmatprep.subr.mxu0 0.0
      %933 = vmatpush1.msra.mxu0 0.0
      %934 = vmatprep.subr.mxu0 0.0
      %935 = vmatpush1.msra.mxu0 0.0
      %936 = vmatprep.subr.mxu0 0.0
      %937 = vmatpush1.msra.mxu0 0.0
      %938 = vmatprep.subr.mxu0 0.0
      %939 = vmatpush1.msra.mxu0 0.0
      %940 = vmatprep.subr.mxu0 0.0
      %941 = vmatpush1.msra.mxu0 0.0
      %942 = vmatprep.subr.mxu0 0.0
      %943 = vmatpush1.msra.mxu0 0.0
      %944 = vmatprep.subr.mxu0 0.0
      %945 = vmatpush1.msra.mxu0 0.0
      %946 = vmatprep.subr.mxu0 0.0
      %947 = vmatpush1.msra.mxu0 0.0
      %948 = vmatprep.subr.mxu0 0.0
      %949 = vmatpush1.msra.mxu0 0.0
      %950 = vmatprep.subr.mxu0 0.0
      %951 = vmatpush1.msra.mxu0 0.0
      %952 = vmatprep.subr.mxu0 0.0
      %953 = vmatpush1.msra.mxu0 0.0
      %954 = vmatprep.subr.mxu0 0.0
      %955 = vmatpush1.msra.mxu0 0.0
      %956 = vmatprep.subr.mxu0 0.0
      %957 = vmatpush1.msra.mxu0 0.0
      %958 = vmatprep.subr.mxu0 0.0
      %959 = vmatpush1.msra.mxu0 0.0
      %960 = vmatprep.subr.mxu0 0.0
      %961 = vmatpush1.msra.mxu0 0.0
      %962 = vmatprep.subr.mxu0 0.0
      %963 = vmatpush1.msra.mxu0 0.0
      %964 = vmatprep.mubr.f32.mxu0 0.0
      %965 = vmatmul.mubr.f32.gmra.mrb[0].mxu0 %v754
      %v966 = vpop.f32.mrb[0].mxu0
      %v967 = vadd.f32 %v515, %v966
      %v968 = vpop.f32.mrb[0].mxu0
      %969 = vmatprep.mubr.f32.mxu0 0.0
      %970 = vmatmul.mubr.f32.gmra.mrb[0].mxu0 %v757
      %v971 = vpop.f32.mrb[0].mxu0
      %v972 = vadd.f32 %v520, %v971
      %v973 = vpop.f32.mrb[0].mxu0
      %974 = vmatprep.mubr.f32.mxu0 0.0
      %975 = vmatmul.mubr.f32.gmra.mrb[0].mxu0 %v760
      %v976 = vpop.f32.mrb[0].mxu0
      %v977 = vadd.f32 %v525, %v976
      %v978 = vpop.f32.mrb[0].mxu0
      %979 = vmatprep.mubr.f32.mxu0 0.0
      %980 = vmatmul.mubr.f32.gmra.mrb[0].mxu0 %v763
      %v981 = vpop.f32.mrb[0].mxu0
      %v982 = vadd.f32 %v530, %v981
      %v983 = vpop.f32.mrb[0].mxu0
      %984 = vmatprep.mubr.f32.mxu0 0.0
      %985 = vmatmul.mubr.f32.gmra.mrb[0].mxu0 %v766
      %v986 = vpop.f32.mrb[0].mxu0
      %v987 = vadd.f32 %v535, %v986
      %v988 = vpop.f32.mrb[0].mxu0
      %989 = vmatprep.mubr.f32.mxu0 0.0
      %990 = vmatmul.mubr.f32.gmra.mrb[0].mxu0 %v769
      %v991 = vpop.f32.mrb[0].mxu0
      %v992 = vadd.f32 %v540, %v991
      %v993 = vpop.f32.mrb[0].mxu0
      %994 = vmatprep.mubr.f32.mxu0 0.0
      %995 = vmatmul.mubr.f32.gmra.mrb[0].mxu0 %v772
      %v996 = vpop.f32.mrb[0].mxu0
      %v997 = vadd.f32 %v545, %v996
      %v998 = vpop.f32.mrb[0].mxu0
      %999 = vmatprep.mubr.f32.mxu0 0.0
      %1000 = vmatmul.mubr.f32.gmra.mrb[0].mxu0 %v775
      %v1001 = vpop.f32.mrb[0].mxu0
      %v1002 = vadd.f32 %v550, %v1001
      %v1003 = vpop.f32.mrb[0].mxu0
      %1004 = vmatprep.mubr.f32.mxu0 0.0
      %1005 = vmatmul.mubr.f32.gmra.mrb[0].mxu0 %v778
      %v1006 = vpop.f32.mrb[0].mxu0
      %v1007 = vadd.f32 %v555, %v1006
      %v1008 = vpop.f32.mrb[0].mxu0
      %1009 = vmatprep.mubr.f32.mxu0 0.0
      %1010 = vmatmul.mubr.f32.gmra.mrb[0].mxu0 %v781
      %v1011 = vpop.f32.mrb[0].mxu0
      %v1012 = vadd.f32 %v560, %v1011
      %v1013 = vpop.f32.mrb[0].mxu0
      %1014 = vmatprep.mubr.f32.mxu0 0.0
      %1015 = vmatmul.mubr.f32.gmra.mrb[0].mxu0 %v784
      %v1016 = vpop.f32.mrb[0].mxu0
      %v1017 = vadd.f32 %v565, %v1016
      %v1018 = vpop.f32.mrb[0].mxu0
      %1019 = vmatprep.mubr.f32.mxu0 0.0
      %1020 = vmatmul.mubr.f32.gmra.mrb[0].mxu0 %v787
      %v1021 = vpop.f32.mrb[0].mxu0
      %v1022 = vadd.f32 %v570, %v1021
      %v1023 = vpop.f32.mrb[0].mxu0
      %1024 = vmatprep.mubr.f32.mxu0 0.0
      %1025 = vmatmul.mubr.f32.gmra.mrb[0].mxu0 %v790
      %v1026 = vpop.f32.mrb[0].mxu0
      %v1027 = vadd.f32 %v575, %v1026
      %v1028 = vpop.f32.mrb[0].mxu0
      %1029 = vmatprep.mubr.f32.mxu0 0.0
      %1030 = vmatmul.mubr.f32.gmra.mrb[0].mxu0 %v793
      %v1031 = vpop.f32.mrb[0].mxu0
      %v1032 = vadd.f32 %v580, %v1031
      %v1033 = vpop.f32.mrb[0].mxu0
      %1034 = vmatprep.mubr.f32.mxu0 0.0
      %1035 = vmatmul.mubr.f32.gmra.mrb[0].mxu0 %v796
      %v1036 = vpop.f32.mrb[0].mxu0
      %v1037 = vadd.f32 %v585, %v1036
      %v1038 = vpop.f32.mrb[0].mxu0
      %1039 = vmatprep.mubr.f32.mxu0 0.0
      %1040 = vmatmul.mubr.f32.gmra.mrb[0].mxu0 %v799
      %v1041 = vpop.f32.mrb[0].mxu0
      %v1042 = vadd.f32 %v590, %v1041
      %v1043 = vpop.f32.mrb[0].mxu0
      %1044 = vmatprep.mubr.f32.mxu0 0.0
      %1045 = vmatmul.mubr.f32.gmra.mrb[0].mxu0 %v802
      %v1046 = vpop.f32.mrb[0].mxu0
      %v1047 = vadd.f32 %v595, %v1046
      %v1048 = vpop.f32.mrb[0].mxu0
      %1049 = vmatprep.mubr.f32.mxu0 0.0
      %1050 = vmatmul.mubr.f32.gmra.mrb[0].mxu0 %v805
      %v1051 = vpop.f32.mrb[0].mxu0
      %v1052 = vadd.f32 %v600, %v1051
      %v1053 = vpop.f32.mrb[0].mxu0
      %1054 = vmatprep.mubr.f32.mxu0 0.0
      %1055 = vmatmul.mubr.f32.gmra.mrb[0].mxu0 %v808
      %v1056 = vpop.f32.mrb[0].mxu0
      %v1057 = vadd.f32 %v605, %v1056
      %v1058 = vpop.f32.mrb[0].mxu0
      %1059 = vmatprep.mubr.f32.mxu0 0.0
      %1060 = vmatmul.mubr.f32.gmra.mrb[0].mxu0 %v811
      %v1061 = vpop.f32.mrb[0].mxu0
      %v1062 = vadd.f32 %v610, %v1061
      %v1063 = vpop.f32.mrb[0].mxu0
      %1064 = vmatprep.mubr.f32.mxu0 0.0
      %1065 = vmatmul.mubr.f32.gmra.mrb[0].mxu0 %v814
      %v1066 = vpop.f32.mrb[0].mxu0
      %v1067 = vadd.f32 %v615, %v1066
      %v1068 = vpop.f32.mrb[0].mxu0
      %1069 = vmatprep.mubr.f32.mxu0 0.0
      %1070 = vmatmul.mubr.f32.gmra.mrb[0].mxu0 %v817
      %v1071 = vpop.f32.mrb[0].mxu0
      %v1072 = vadd.f32 %v620, %v1071
      %v1073 = vpop.f32.mrb[0].mxu0
      %1074 = vmatprep.mubr.f32.mxu0 0.0
      %1075 = vmatmul.mubr.f32.gmra.mrb[0].mxu0 %v820
      %v1076 = vpop.f32.mrb[0].mxu0
      %v1077 = vadd.f32 %v625, %v1076
      %v1078 = vpop.f32.mrb[0].mxu0
      %1079 = vmatprep.mubr.f32.mxu0 0.0
      %1080 = vmatmul.mubr.f32.gmra.mrb[0].mxu0 %v823
      %v1081 = vpop.f32.mrb[0].mxu0
      %v1082 = vadd.f32 %v630, %v1081
      %v1083 = vpop.f32.mrb[0].mxu0
      %1084 = vmatprep.mubr.f32.mxu0 0.0
      %1085 = vmatmul.mubr.f32.gmra.mrb[0].mxu0 %v826
      %v1086 = vpop.f32.mrb[0].mxu0
      %v1087 = vadd.f32 %v635, %v1086
      %v1088 = vpop.f32.mrb[0].mxu0
      %1089 = vmatprep.mubr.f32.mxu0 0.0
      %1090 = vmatmul.mubr.f32.gmra.mrb[0].mxu0 %v829
      %v1091 = vpop.f32.mrb[0].mxu0
      %v1092 = vadd.f32 %v640, %v1091
      %v1093 = vpop.f32.mrb[0].mxu0
      %1094 = vmatprep.mubr.f32.mxu0 0.0
      %1095 = vmatmul.mubr.f32.gmra.mrb[0].mxu0 %v832
      %v1096 = vpop.f32.mrb[0].mxu0
      %v1097 = vadd.f32 %v645, %v1096
      %v1098 = vpop.f32.mrb[0].mxu0
      %1099 = vmatprep.mubr.f32.mxu0 0.0
      %1100 = vmatmul.mubr.f32.gmra.mrb[0].mxu0 %v835
      %v1101 = vpop.f32.mrb[0].mxu0
      %v1102 = vadd.f32 %v650, %v1101
      %v1103 = vpop.f32.mrb[0].mxu0
      %1104 = vmatprep.mubr.f32.mxu0 0.0
      %1105 = vmatmul.mubr.f32.gmra.mrb[0].mxu0 %v838
      %v1106 = vpop.f32.mrb[0].mxu0
      %v1107 = vadd.f32 %v655, %v1106
      %v1108 = vpop.f32.mrb[0].mxu0
      %1109 = vmatprep.mubr.f32.mxu0 0.0
      %1110 = vmatmul.mubr.f32.gmra.mrb[0].mxu0 %v841
      %v1111 = vpop.f32.mrb[0].mxu0
      %v1112 = vadd.f32 %v660, %v1111
      %v1113 = vpop.f32.mrb[0].mxu0
      %1114 = vmatprep.mubr.f32.mxu0 0.0
      %1115 = vmatmul.mubr.f32.gmra.mrb[0].mxu0 %v844
      %v1116 = vpop.f32.mrb[0].mxu0
      %v1117 = vadd.f32 %v665, %v1116
      %v1118 = vpop.f32.mrb[0].mxu0
      %1119 = vmatprep.mubr.f32.mxu0 0.0
      %1120 = vmatmul.mubr.f32.gmra.mrb[0].mxu0 %v847
      %v1121 = vpop.f32.mrb[0].mxu0
      %v1122 = vadd.f32 %v670, %v1121
      %v1123 = vpop.f32.mrb[0].mxu0
      %1124 = vmatprep.mubr.f32.mxu0 0.0
      %1125 = vmatmul.mubr.f32.gmra.mrb[0].mxu0 %v850
      %v1126 = vpop.f32.mrb[0].mxu0
      %v1127 = vadd.f32 %v675, %v1126
      %v1128 = vpop.f32.mrb[0].mxu0
      %1129 = vmatprep.mubr.f32.mxu0 0.0
      %1130 = vmatmul.mubr.f32.gmra.mrb[0].mxu0 %v853
      %v1131 = vpop.f32.mrb[0].mxu0
      %v1132 = vadd.f32 %v680, %v1131
      %v1133 = vpop.f32.mrb[0].mxu0
      %1134 = vmatprep.mubr.f32.mxu0 0.0
      %1135 = vmatmul.mubr.f32.gmra.mrb[0].mxu0 %v856
      %v1136 = vpop.f32.mrb[0].mxu0
      %v1137 = vadd.f32 %v685, %v1136
      %v1138 = vpop.f32.mrb[0].mxu0
      %1139 = vmatprep.mubr.f32.mxu0 0.0
      %1140 = vmatmul.mubr.f32.gmra.mrb[0].mxu0 %v859
      %v1141 = vpop.f32.mrb[0].mxu0
      %v1142 = vadd.f32 %v690, %v1141
      %v1143 = vpop.f32.mrb[0].mxu0
      %1144 = vmatprep.mubr.f32.mxu0 0.0
      %1145 = vmatmul.mubr.f32.gmra.mrb[0].mxu0 %v862
      %v1146 = vpop.f32.mrb[0].mxu0
      %v1147 = vadd.f32 %v695, %v1146
      %v1148 = vpop.f32.mrb[0].mxu0
      %1149 = vmatprep.mubr.f32.mxu0 0.0
      %1150 = vmatmul.mubr.f32.gmra.mrb[0].mxu0 %v865
      %v1151 = vpop.f32.mrb[0].mxu0
      %v1152 = vadd.f32 %v700, %v1151
      %v1153 = vpop.f32.mrb[0].mxu0
      %1154 = vmatprep.mubr.f32.mxu0 0.0
      %1155 = vmatmul.mubr.f32.gmra.mrb[0].mxu0 %v868
      %v1156 = vpop.f32.mrb[0].mxu0
      %v1157 = vadd.f32 %v705, %v1156
      %v1158 = vpop.f32.mrb[0].mxu0
      %1159 = vmatprep.mubr.f32.mxu0 0.0
      %1160 = vmatmul.mubr.f32.gmra.mrb[0].mxu0 %v871
      %v1161 = vpop.f32.mrb[0].mxu0
      %v1162 = vadd.f32 %v710, %v1161
      %v1163 = vpop.f32.mrb[0].mxu0
      %1164 = vmatprep.mubr.f32.mxu0 0.0
      %1165 = vmatmul.mubr.f32.gmra.mrb[0].mxu0 %v874
      %v1166 = vpop.f32.mrb[0].mxu0
      %v1167 = vadd.f32 %v715, %v1166
      %v1168 = vpop.f32.mrb[0].mxu0
      %1169 = vmatprep.mubr.f32.mxu0 0.0
      %1170 = vmatmul.mubr.f32.gmra.mrb[0].mxu0 %v877
      %v1171 = vpop.f32.mrb[0].mxu0
      %v1172 = vadd.f32 %v720, %v1171
      %v1173 = vpop.f32.mrb[0].mxu0
      %1174 = vmatprep.mubr.f32.mxu0 0.0
      %1175 = vmatmul.mubr.f32.gmra.mrb[0].mxu0 %v880
      %v1176 = vpop.f32.mrb[0].mxu0
      %v1177 = vadd.f32 %v725, %v1176
      %v1178 = vpop.f32.mrb[0].mxu0
      %1179 = vmatprep.mubr.f32.mxu0 0.0
      %1180 = vmatmul.mubr.f32.gmra.mrb[0].mxu0 %v883
      %v1181 = vpop.f32.mrb[0].mxu0
      %v1182 = vadd.f32 %v730, %v1181
      %v1183 = vpop.f32.mrb[0].mxu0
      %1184 = vmatprep.mubr.f32.mxu0 0.0
      %1185 = vmatmul.mubr.f32.gmra.mrb[0].mxu0 %v886
      %v1186 = vpop.f32.mrb[0].mxu0
      %v1187 = vadd.f32 %v735, %v1186
      %v1188 = vpop.f32.mrb[0].mxu0
      %1189 = vmatprep.mubr.f32.mxu0 0.0
      %1190 = vmatmul.mubr.f32.gmra.mrb[0].mxu0 %v889
      %v1191 = vpop.f32.mrb[0].mxu0
      %v1192 = vadd.f32 %v740, %v1191
      %v1193 = vpop.f32.mrb[0].mxu0
      %1194 = vmatprep.mubr.f32.mxu0 0.0
      %1195 = vmatmul.mubr.f32.gmra.mrb[0].mxu0 %v892
      %v1196 = vpop.f32.mrb[0].mxu0
      %v1197 = vadd.f32 %v745, %v1196
      %v1198 = vpop.f32.mrb[0].mxu0
      %1199 = vmatprep.mubr.f32.mxu0 0.0
      %1200 = vmatmul.mubr.f32.gmra.mrb[0].mxu0 %v895
      %v1201 = vpop.f32.mrb[0].mxu0
      %v1202 = vadd.f32 %v750, %v1201
      %v1203 = vpop.f32.mrb[0].mxu0
      %1204 = vdwg.mxu0
      %s1205 = sadd.s32 %s194, 48
      %s1206 = scalar_lea.vmem %s183, %s1205
      %v1207 = vld [vmem:[%s1206] sm:$0xff]
      %v1208 = vld [vmem:[%s1206 + $0x8] sm:$0xff]
      %v1209 = vld [vmem:[%s1206 + $0x10] sm:$0xff]
      %v1210 = vld [vmem:[%s1206 + $0x18] sm:$0xff]
      %v1211 = vld [vmem:[%s1206 + $0x20] sm:$0xff]
      %v1212 = vld [vmem:[%s1206 + $0x28] sm:$0xff]
      %v1213 = vld [vmem:[%s1206 + $0x30] sm:$0xff]
      %v1214 = vld [vmem:[%s1206 + $0x38] sm:$0xff]
      %v1215 = vld [vmem:[%s1206 + $0x40] sm:$0xff]
      %v1216 = vld [vmem:[%s1206 + $0x48] sm:$0xff]
      %v1217 = vld [vmem:[%s1206 + $0x50] sm:$0xff]
      %v1218 = vld [vmem:[%s1206 + $0x58] sm:$0xff]
      %v1219 = vld [vmem:[%s1206 + $0x60] sm:$0xff]
      %v1220 = vld [vmem:[%s1206 + $0x68] sm:$0xff]
      %v1221 = vld [vmem:[%s1206 + $0x70] sm:$0xff]
      %v1222 = vld [vmem:[%s1206 + $0x78] sm:$0xff]
      %v1223 = vld [vmem:[%s1206 + $0x80] sm:$0xff]
      %v1224 = vld [vmem:[%s1206 + $0x88] sm:$0xff]
      %v1225 = vld [vmem:[%s1206 + $0x90] sm:$0xff]
      %v1226 = vld [vmem:[%s1206 + $0x98] sm:$0xff]
      %v1227 = vld [vmem:[%s1206 + $0xa0] sm:$0xff]
      %v1228 = vld [vmem:[%s1206 + $0xa8] sm:$0xff]
      %v1229 = vld [vmem:[%s1206 + $0xb0] sm:$0xff]
      %v1230 = vld [vmem:[%s1206 + $0xb8] sm:$0xff]
      %v1231 = vld [vmem:[%s1206 + $0xc0] sm:$0xff]
      %v1232 = vld [vmem:[%s1206 + $0xc8] sm:$0xff]
      %v1233 = vld [vmem:[%s1206 + $0xd0] sm:$0xff]
      %v1234 = vld [vmem:[%s1206 + $0xd8] sm:$0xff]
      %v1235 = vld [vmem:[%s1206 + $0xe0] sm:$0xff]
      %v1236 = vld [vmem:[%s1206 + $0xe8] sm:$0xff]
      %v1237 = vld [vmem:[%s1206 + $0xf0] sm:$0xff]
      %v1238 = vld [vmem:[%s1206 + $0xf8] sm:$0xff]
      %v1239 = vld [vmem:[%s1206 + $0x100] sm:$0xff]
      %v1240 = vld [vmem:[%s1206 + $0x108] sm:$0xff]
      %v1241 = vld [vmem:[%s1206 + $0x110] sm:$0xff]
      %v1242 = vld [vmem:[%s1206 + $0x118] sm:$0xff]
      %v1243 = vld [vmem:[%s1206 + $0x120] sm:$0xff]
      %v1244 = vld [vmem:[%s1206 + $0x128] sm:$0xff]
      %v1245 = vld [vmem:[%s1206 + $0x130] sm:$0xff]
      %v1246 = vld [vmem:[%s1206 + $0x138] sm:$0xff]
      %v1247 = vld [vmem:[%s1206 + $0x140] sm:$0xff]
      %v1248 = vld [vmem:[%s1206 + $0x148] sm:$0xff]
      %v1249 = vld [vmem:[%s1206 + $0x150] sm:$0xff]
      %v1250 = vld [vmem:[%s1206 + $0x158] sm:$0xff]
      %v1251 = vld [vmem:[%s1206 + $0x160] sm:$0xff]
      %v1252 = vld [vmem:[%s1206 + $0x168] sm:$0xff]
      %v1253 = vld [vmem:[%s1206 + $0x170] sm:$0xff]
      %v1254 = vld [vmem:[%s1206 + $0x178] sm:$0xff]
      %s1255 = scalar_lea.vmem %s1, 32
      %v1256 = vld [vmem:[%s1255] sm:$0xff]
      %v1257 = vld [vmem:[%s1255 + $0x8] sm:$0xf]
      %v1259 = vsel %vm299, %v1207, 0
      %v1262 = vsel %vm299, %v1208, 0
      %v1265 = vsel %vm299, %v1209, 0
      %v1268 = vsel %vm299, %v1210, 0
      %v1271 = vsel %vm299, %v1211, 0
      %v1274 = vsel %vm299, %v1212, 0
      %v1277 = vsel %vm299, %v1213, 0
      %v1280 = vsel %vm299, %v1214, 0
      %v1283 = vsel %vm299, %v1215, 0
      %v1286 = vsel %vm299, %v1216, 0
      %v1289 = vsel %vm299, %v1217, 0
      %v1292 = vsel %vm299, %v1218, 0
      %v1295 = vsel %vm299, %v1219, 0
      %v1298 = vsel %vm299, %v1220, 0
      %v1301 = vsel %vm299, %v1221, 0
      %v1304 = vsel %vm299, %v1222, 0
      %v1307 = vsel %vm299, %v1223, 0
      %v1310 = vsel %vm299, %v1224, 0
      %v1313 = vsel %vm299, %v1225, 0
      %v1316 = vsel %vm299, %v1226, 0
      %v1319 = vsel %vm299, %v1227, 0
      %v1322 = vsel %vm299, %v1228, 0
      %v1325 = vsel %vm299, %v1229, 0
      %v1328 = vsel %vm299, %v1230, 0
      %v1331 = vsel %vm299, %v1231, 0
      %v1334 = vsel %vm299, %v1232, 0
      %v1337 = vsel %vm299, %v1233, 0
      %v1340 = vsel %vm299, %v1234, 0
      %v1343 = vsel %vm299, %v1235, 0
      %v1346 = vsel %vm299, %v1236, 0
      %v1349 = vsel %vm299, %v1237, 0
      %v1352 = vsel %vm299, %v1238, 0
      %v1355 = vsel %vm299, %v1239, 0
      %v1358 = vsel %vm299, %v1240, 0
      %v1361 = vsel %vm299, %v1241, 0
      %v1364 = vsel %vm299, %v1242, 0
      %v1367 = vsel %vm299, %v1243, 0
      %v1370 = vsel %vm299, %v1244, 0
      %v1373 = vsel %vm299, %v1245, 0
      %v1376 = vsel %vm299, %v1246, 0
      %v1379 = vsel %vm299, %v1247, 0
      %v1382 = vsel %vm299, %v1248, 0
      %v1385 = vsel %vm299, %v1249, 0
      %v1388 = vsel %vm299, %v1250, 0
      %v1391 = vsel %vm299, %v1251, 0
      %v1394 = vsel %vm299, %v1252, 0
      %v1397 = vsel %vm299, %v1253, 0
      %v1400 = vsel %vm299, %v1254, 0
      %v1403 = vsel %vm444, %v1257, 0
      %1405 = vmatprep.subr.mxu0 0.0
      %1406 = vmatpush1.msra.mxu0 %v1256
      %1407 = vmatprep.subr.mxu0 0.0
      %1408 = vmatpush1.msra.mxu0 %v1403
      %1409 = vmatprep.subr.mxu0 0.0
      %1410 = vmatpush1.msra.mxu0 0.0
      %1411 = vmatprep.subr.mxu0 0.0
      %1412 = vmatpush1.msra.mxu0 0.0
      %1413 = vmatprep.subr.mxu0 0.0
      %1414 = vmatpush1.msra.mxu0 0.0
      %1415 = vmatprep.subr.mxu0 0.0
      %1416 = vmatpush1.msra.mxu0 0.0
      %1417 = vmatprep.subr.mxu0 0.0
      %1418 = vmatpush1.msra.mxu0 0.0
      %1419 = vmatprep.subr.mxu0 0.0
      %1420 = vmatpush1.msra.mxu0 0.0
      %1421 = vmatprep.subr.mxu0 0.0
      %1422 = vmatpush1.msra.mxu0 0.0
      %1423 = vmatprep.subr.mxu0 0.0
      %1424 = vmatpush1.msra.mxu0 0.0
      %1425 = vmatprep.subr.mxu0 0.0
      %1426 = vmatpush1.msra.mxu0 0.0
      %1427 = vmatprep.subr.mxu0 0.0
      %1428 = vmatpush1.msra.mxu0 0.0
      %1429 = vmatprep.subr.mxu0 0.0
      %1430 = vmatpush1.msra.mxu0 0.0
      %1431 = vmatprep.subr.mxu0 0.0
      %1432 = vmatpush1.msra.mxu0 0.0
      %1433 = vmatprep.subr.mxu0 0.0
      %1434 = vmatpush1.msra.mxu0 0.0
      %1435 = vmatprep.subr.mxu0 0.0
      %1436 = vmatpush1.msra.mxu0 0.0
      %1437 = vmatprep.subr.mxu0 0.0
      %1438 = vmatpush1.msra.mxu0 0.0
      %1439 = vmatprep.subr.mxu0 0.0
      %1440 = vmatpush1.msra.mxu0 0.0
      %1441 = vmatprep.subr.mxu0 0.0
      %1442 = vmatpush1.msra.mxu0 0.0
      %1443 = vmatprep.subr.mxu0 0.0
      %1444 = vmatpush1.msra.mxu0 0.0
      %1445 = vmatprep.subr.mxu0 0.0
      %1446 = vmatpush1.msra.mxu0 0.0
      %1447 = vmatprep.subr.mxu0 0.0
      %1448 = vmatpush1.msra.mxu0 0.0
      %1449 = vmatprep.subr.mxu0 0.0
      %1450 = vmatpush1.msra.mxu0 0.0
      %1451 = vmatprep.subr.mxu0 0.0
      %1452 = vmatpush1.msra.mxu0 0.0
      %1453 = vmatprep.subr.mxu0 0.0
      %1454 = vmatpush1.msra.mxu0 0.0
      %1455 = vmatprep.subr.mxu0 0.0
      %1456 = vmatpush1.msra.mxu0 0.0
      %1457 = vmatprep.subr.mxu0 0.0
      %1458 = vmatpush1.msra.mxu0 0.0
      %1459 = vmatprep.subr.mxu0 0.0
      %1460 = vmatpush1.msra.mxu0 0.0
      %1461 = vmatprep.subr.mxu0 0.0
      %1462 = vmatpush1.msra.mxu0 0.0
      %1463 = vmatprep.subr.mxu0 0.0
      %1464 = vmatpush1.msra.mxu0 0.0
      %1465 = vmatprep.subr.mxu0 0.0
      %1466 = vmatpush1.msra.mxu0 0.0
      %1467 = vmatprep.subr.mxu0 0.0
      %1468 = vmatpush1.msra.mxu0 0.0
      %1469 = vmatprep.mubr.f32.mxu0 0.0
      %1470 = vmatmul.mubr.f32.gmra.mrb[0].mxu0 %v1259
      %v1471 = vpop.f32.mrb[0].mxu0
      %v1472 = vadd.f32 0.0, %v1471
      %v1473 = vpop.f32.mrb[0].mxu0
      %1474 = vmatprep.mubr.f32.mxu0 0.0
      %1475 = vmatmul.mubr.f32.gmra.mrb[0].mxu0 %v1262
      %v1476 = vpop.f32.mrb[0].mxu0
      %v1477 = vadd.f32 0.0, %v1476
      %v1478 = vpop.f32.mrb[0].mxu0
      %1479 = vmatprep.mubr.f32.mxu0 0.0
      %1480 = vmatmul.mubr.f32.gmra.mrb[0].mxu0 %v1265
      %v1481 = vpop.f32.mrb[0].mxu0
      %v1482 = vadd.f32 0.0, %v1481
      %v1483 = vpop.f32.mrb[0].mxu0
      %1484 = vmatprep.mubr.f32.mxu0 0.0
      %1485 = vmatmul.mubr.f32.gmra.mrb[0].mxu0 %v1268
      %v1486 = vpop.f32.mrb[0].mxu0
      %v1487 = vadd.f32 0.0, %v1486
      %v1488 = vpop.f32.mrb[0].mxu0
      %1489 = vmatprep.mubr.f32.mxu0 0.0
      %1490 = vmatmul.mubr.f32.gmra.mrb[0].mxu0 %v1271
      %v1491 = vpop.f32.mrb[0].mxu0
      %v1492 = vadd.f32 0.0, %v1491
      %v1493 = vpop.f32.mrb[0].mxu0
      %1494 = vmatprep.mubr.f32.mxu0 0.0
      %1495 = vmatmul.mubr.f32.gmra.mrb[0].mxu0 %v1274
      %v1496 = vpop.f32.mrb[0].mxu0
      %v1497 = vadd.f32 0.0, %v1496
      %v1498 = vpop.f32.mrb[0].mxu0
      %1499 = vmatprep.mubr.f32.mxu0 0.0
      %1500 = vmatmul.mubr.f32.gmra.mrb[0].mxu0 %v1277
      %v1501 = vpop.f32.mrb[0].mxu0
      %v1502 = vadd.f32 0.0, %v1501
      %v1503 = vpop.f32.mrb[0].mxu0
      %1504 = vmatprep.mubr.f32.mxu0 0.0
      %1505 = vmatmul.mubr.f32.gmra.mrb[0].mxu0 %v1280
      %v1506 = vpop.f32.mrb[0].mxu0
      %v1507 = vadd.f32 0.0, %v1506
      %v1508 = vpop.f32.mrb[0].mxu0
      %1509 = vmatprep.mubr.f32.mxu0 0.0
      %1510 = vmatmul.mubr.f32.gmra.mrb[0].mxu0 %v1283
      %v1511 = vpop.f32.mrb[0].mxu0
      %v1512 = vadd.f32 0.0, %v1511
      %v1513 = vpop.f32.mrb[0].mxu0
      %1514 = vmatprep.mubr.f32.mxu0 0.0
      %1515 = vmatmul.mubr.f32.gmra.mrb[0].mxu0 %v1286
      %v1516 = vpop.f32.mrb[0].mxu0
      %v1517 = vadd.f32 0.0, %v1516
      %v1518 = vpop.f32.mrb[0].mxu0
      %1519 = vmatprep.mubr.f32.mxu0 0.0
      %1520 = vmatmul.mubr.f32.gmra.mrb[0].mxu0 %v1289
      %v1521 = vpop.f32.mrb[0].mxu0
      %v1522 = vadd.f32 0.0, %v1521
      %v1523 = vpop.f32.mrb[0].mxu0
      %1524 = vmatprep.mubr.f32.mxu0 0.0
      %1525 = vmatmul.mubr.f32.gmra.mrb[0].mxu0 %v1292
      %v1526 = vpop.f32.mrb[0].mxu0
      %v1527 = vadd.f32 0.0, %v1526
      %v1528 = vpop.f32.mrb[0].mxu0
      %1529 = vmatprep.mubr.f32.mxu0 0.0
      %1530 = vmatmul.mubr.f32.gmra.mrb[0].mxu0 %v1295
      %v1531 = vpop.f32.mrb[0].mxu0
      %v1532 = vadd.f32 0.0, %v1531
      %v1533 = vpop.f32.mrb[0].mxu0
      %1534 = vmatprep.mubr.f32.mxu0 0.0
      %1535 = vmatmul.mubr.f32.gmra.mrb[0].mxu0 %v1298
      %v1536 = vpop.f32.mrb[0].mxu0
      %v1537 = vadd.f32 0.0, %v1536
      %v1538 = vpop.f32.mrb[0].mxu0
      %1539 = vmatprep.mubr.f32.mxu0 0.0
      %1540 = vmatmul.mubr.f32.gmra.mrb[0].mxu0 %v1301
      %v1541 = vpop.f32.mrb[0].mxu0
      %v1542 = vadd.f32 0.0, %v1541
      %v1543 = vpop.f32.mrb[0].mxu0
      %1544 = vmatprep.mubr.f32.mxu0 0.0
      %1545 = vmatmul.mubr.f32.gmra.mrb[0].mxu0 %v1304
      %v1546 = vpop.f32.mrb[0].mxu0
      %v1547 = vadd.f32 0.0, %v1546
      %v1548 = vpop.f32.mrb[0].mxu0
      %1549 = vmatprep.mubr.f32.mxu0 0.0
      %1550 = vmatmul.mubr.f32.gmra.mrb[0].mxu0 %v1307
      %v1551 = vpop.f32.mrb[0].mxu0
      %v1552 = vadd.f32 0.0, %v1551
      %v1553 = vpop.f32.mrb[0].mxu0
      %1554 = vmatprep.mubr.f32.mxu0 0.0
      %1555 = vmatmul.mubr.f32.gmra.mrb[0].mxu0 %v1310
      %v1556 = vpop.f32.mrb[0].mxu0
      %v1557 = vadd.f32 0.0, %v1556
      %v1558 = vpop.f32.mrb[0].mxu0
      %1559 = vmatprep.mubr.f32.mxu0 0.0
      %1560 = vmatmul.mubr.f32.gmra.mrb[0].mxu0 %v1313
      %v1561 = vpop.f32.mrb[0].mxu0
      %v1562 = vadd.f32 0.0, %v1561
      %v1563 = vpop.f32.mrb[0].mxu0
      %1564 = vmatprep.mubr.f32.mxu0 0.0
      %1565 = vmatmul.mubr.f32.gmra.mrb[0].mxu0 %v1316
      %v1566 = vpop.f32.mrb[0].mxu0
      %v1567 = vadd.f32 0.0, %v1566
      %v1568 = vpop.f32.mrb[0].mxu0
      %1569 = vmatprep.mubr.f32.mxu0 0.0
      %1570 = vmatmul.mubr.f32.gmra.mrb[0].mxu0 %v1319
      %v1571 = vpop.f32.mrb[0].mxu0
      %v1572 = vadd.f32 0.0, %v1571
      %v1573 = vpop.f32.mrb[0].mxu0
      %1574 = vmatprep.mubr.f32.mxu0 0.0
      %1575 = vmatmul.mubr.f32.gmra.mrb[0].mxu0 %v1322
      %v1576 = vpop.f32.mrb[0].mxu0
      %v1577 = vadd.f32 0.0, %v1576
      %v1578 = vpop.f32.mrb[0].mxu0
      %1579 = vmatprep.mubr.f32.mxu0 0.0
      %1580 = vmatmul.mubr.f32.gmra.mrb[0].mxu0 %v1325
      %v1581 = vpop.f32.mrb[0].mxu0
      %v1582 = vadd.f32 0.0, %v1581
      %v1583 = vpop.f32.mrb[0].mxu0
      %1584 = vmatprep.mubr.f32.mxu0 0.0
      %1585 = vmatmul.mubr.f32.gmra.mrb[0].mxu0 %v1328
      %v1586 = vpop.f32.mrb[0].mxu0
      %v1587 = vadd.f32 0.0, %v1586
      %v1588 = vpop.f32.mrb[0].mxu0
      %1589 = vmatprep.mubr.f32.mxu0 0.0
      %1590 = vmatmul.mubr.f32.gmra.mrb[0].mxu0 %v1331
      %v1591 = vpop.f32.mrb[0].mxu0
      %v1592 = vadd.f32 0.0, %v1591
      %v1593 = vpop.f32.mrb[0].mxu0
      %1594 = vmatprep.mubr.f32.mxu0 0.0
      %1595 = vmatmul.mubr.f32.gmra.mrb[0].mxu0 %v1334
      %v1596 = vpop.f32.mrb[0].mxu0
      %v1597 = vadd.f32 0.0, %v1596
      %v1598 = vpop.f32.mrb[0].mxu0
      %1599 = vmatprep.mubr.f32.mxu0 0.0
      %1600 = vmatmul.mubr.f32.gmra.mrb[0].mxu0 %v1337
      %v1601 = vpop.f32.mrb[0].mxu0
      %v1602 = vadd.f32 0.0, %v1601
      %v1603 = vpop.f32.mrb[0].mxu0
      %1604 = vmatprep.mubr.f32.mxu0 0.0
      %1605 = vmatmul.mubr.f32.gmra.mrb[0].mxu0 %v1340
      %v1606 = vpop.f32.mrb[0].mxu0
      %v1607 = vadd.f32 0.0, %v1606
      %v1608 = vpop.f32.mrb[0].mxu0
      %1609 = vmatprep.mubr.f32.mxu0 0.0
      %1610 = vmatmul.mubr.f32.gmra.mrb[0].mxu0 %v1343
      %v1611 = vpop.f32.mrb[0].mxu0
      %v1612 = vadd.f32 0.0, %v1611
      %v1613 = vpop.f32.mrb[0].mxu0
      %1614 = vmatprep.mubr.f32.mxu0 0.0
      %1615 = vmatmul.mubr.f32.gmra.mrb[0].mxu0 %v1346
      %v1616 = vpop.f32.mrb[0].mxu0
      %v1617 = vadd.f32 0.0, %v1616
      %v1618 = vpop.f32.mrb[0].mxu0
      %1619 = vmatprep.mubr.f32.mxu0 0.0
      %1620 = vmatmul.mubr.f32.gmra.mrb[0].mxu0 %v1349
      %v1621 = vpop.f32.mrb[0].mxu0
      %v1622 = vadd.f32 0.0, %v1621
      %v1623 = vpop.f32.mrb[0].mxu0
      %1624 = vmatprep.mubr.f32.mxu0 0.0
      %1625 = vmatmul.mubr.f32.gmra.mrb[0].mxu0 %v1352
      %v1626 = vpop.f32.mrb[0].mxu0
      %v1627 = vadd.f32 0.0, %v1626
      %v1628 = vpop.f32.mrb[0].mxu0
      %1629 = vmatprep.mubr.f32.mxu0 0.0
      %1630 = vmatmul.mubr.f32.gmra.mrb[0].mxu0 %v1355
      %v1631 = vpop.f32.mrb[0].mxu0
      %v1632 = vadd.f32 0.0, %v1631
      %v1633 = vpop.f32.mrb[0].mxu0
      %1634 = vmatprep.mubr.f32.mxu0 0.0
      %1635 = vmatmul.mubr.f32.gmra.mrb[0].mxu0 %v1358
      %v1636 = vpop.f32.mrb[0].mxu0
      %v1637 = vadd.f32 0.0, %v1636
      %v1638 = vpop.f32.mrb[0].mxu0
      %1639 = vmatprep.mubr.f32.mxu0 0.0
      %1640 = vmatmul.mubr.f32.gmra.mrb[0].mxu0 %v1361
      %v1641 = vpop.f32.mrb[0].mxu0
      %v1642 = vadd.f32 0.0, %v1641
      %v1643 = vpop.f32.mrb[0].mxu0
      %1644 = vmatprep.mubr.f32.mxu0 0.0
      %1645 = vmatmul.mubr.f32.gmra.mrb[0].mxu0 %v1364
      %v1646 = vpop.f32.mrb[0].mxu0
      %v1647 = vadd.f32 0.0, %v1646
      %v1648 = vpop.f32.mrb[0].mxu0
      %1649 = vmatprep.mubr.f32.mxu0 0.0
      %1650 = vmatmul.mubr.f32.gmra.mrb[0].mxu0 %v1367
      %v1651 = vpop.f32.mrb[0].mxu0
      %v1652 = vadd.f32 0.0, %v1651
      %v1653 = vpop.f32.mrb[0].mxu0
      %1654 = vmatprep.mubr.f32.mxu0 0.0
      %1655 = vmatmul.mubr.f32.gmra.mrb[0].mxu0 %v1370
      %v1656 = vpop.f32.mrb[0].mxu0
      %v1657 = vadd.f32 0.0, %v1656
      %v1658 = vpop.f32.mrb[0].mxu0
      %1659 = vmatprep.mubr.f32.mxu0 0.0
      %1660 = vmatmul.mubr.f32.gmra.mrb[0].mxu0 %v1373
      %v1661 = vpop.f32.mrb[0].mxu0
      %v1662 = vadd.f32 0.0, %v1661
      %v1663 = vpop.f32.mrb[0].mxu0
      %1664 = vmatprep.mubr.f32.mxu0 0.0
      %1665 = vmatmul.mubr.f32.gmra.mrb[0].mxu0 %v1376
      %v1666 = vpop.f32.mrb[0].mxu0
      %v1667 = vadd.f32 0.0, %v1666
      %v1668 = vpop.f32.mrb[0].mxu0
      %1669 = vmatprep.mubr.f32.mxu0 0.0
      %1670 = vmatmul.mubr.f32.gmra.mrb[0].mxu0 %v1379
      %v1671 = vpop.f32.mrb[0].mxu0
      %v1672 = vadd.f32 0.0, %v1671
      %v1673 = vpop.f32.mrb[0].mxu0
      %1674 = vmatprep.mubr.f32.mxu0 0.0
      %1675 = vmatmul.mubr.f32.gmra.mrb[0].mxu0 %v1382
      %v1676 = vpop.f32.mrb[0].mxu0
      %v1677 = vadd.f32 0.0, %v1676
      %v1678 = vpop.f32.mrb[0].mxu0
      %1679 = vmatprep.mubr.f32.mxu0 0.0
      %1680 = vmatmul.mubr.f32.gmra.mrb[0].mxu0 %v1385
      %v1681 = vpop.f32.mrb[0].mxu0
      %v1682 = vadd.f32 0.0, %v1681
      %v1683 = vpop.f32.mrb[0].mxu0
      %1684 = vmatprep.mubr.f32.mxu0 0.0
      %1685 = vmatmul.mubr.f32.gmra.mrb[0].mxu0 %v1388
      %v1686 = vpop.f32.mrb[0].mxu0
      %v1687 = vadd.f32 0.0, %v1686
      %v1688 = vpop.f32.mrb[0].mxu0
      %1689 = vmatprep.mubr.f32.mxu0 0.0
      %1690 = vmatmul.mubr.f32.gmra.mrb[0].mxu0 %v1391
      %v1691 = vpop.f32.mrb[0].mxu0
      %v1692 = vadd.f32 0.0, %v1691
      %v1693 = vpop.f32.mrb[0].mxu0
      %1694 = vmatprep.mubr.f32.mxu0 0.0
      %1695 = vmatmul.mubr.f32.gmra.mrb[0].mxu0 %v1394
      %v1696 = vpop.f32.mrb[0].mxu0
      %v1697 = vadd.f32 0.0, %v1696
      %v1698 = vpop.f32.mrb[0].mxu0
      %1699 = vmatprep.mubr.f32.mxu0 0.0
      %1700 = vmatmul.mubr.f32.gmra.mrb[0].mxu0 %v1397
      %v1701 = vpop.f32.mrb[0].mxu0
      %v1702 = vadd.f32 0.0, %v1701
      %v1703 = vpop.f32.mrb[0].mxu0
      %1704 = vmatprep.mubr.f32.mxu0 0.0
      %1705 = vmatmul.mubr.f32.gmra.mrb[0].mxu0 %v1400
      %v1706 = vpop.f32.mrb[0].mxu0
      %v1707 = vadd.f32 0.0, %v1706
      %v1708 = vpop.f32.mrb[0].mxu0
      %1709 = vdwg.mxu0
      %v1710 = vadd.f32 %v967, %v1472
      %v1711 = vadd.f32 %v972, %v1477
      %v1712 = vadd.f32 %v977, %v1482
      %v1713 = vadd.f32 %v982, %v1487
      %v1714 = vadd.f32 %v987, %v1492
      %v1715 = vadd.f32 %v992, %v1497
      %v1716 = vadd.f32 %v997, %v1502
      %v1717 = vadd.f32 %v1002, %v1507
      %v1718 = vadd.f32 %v1007, %v1512
      %v1719 = vadd.f32 %v1012, %v1517
      %v1720 = vadd.f32 %v1017, %v1522
      %v1721 = vadd.f32 %v1022, %v1527
      %v1722 = vadd.f32 %v1027, %v1532
      %v1723 = vadd.f32 %v1032, %v1537
      %v1724 = vadd.f32 %v1037, %v1542
      %v1725 = vadd.f32 %v1042, %v1547
      %v1726 = vadd.f32 %v1047, %v1552
      %v1727 = vadd.f32 %v1052, %v1557
      %v1728 = vadd.f32 %v1057, %v1562
      %v1729 = vadd.f32 %v1062, %v1567
      %v1730 = vadd.f32 %v1067, %v1572
      %v1731 = vadd.f32 %v1072, %v1577
      %v1732 = vadd.f32 %v1077, %v1582
      %v1733 = vadd.f32 %v1082, %v1587
      %v1734 = vadd.f32 %v1087, %v1592
      %v1735 = vadd.f32 %v1092, %v1597
      %v1736 = vadd.f32 %v1097, %v1602
      %v1737 = vadd.f32 %v1102, %v1607
      %v1738 = vadd.f32 %v1107, %v1612
      %v1739 = vadd.f32 %v1112, %v1617
      %v1740 = vadd.f32 %v1117, %v1622
      %v1741 = vadd.f32 %v1122, %v1627
      %v1742 = vadd.f32 %v1127, %v1632
      %v1743 = vadd.f32 %v1132, %v1637
      %v1744 = vadd.f32 %v1137, %v1642
      %v1745 = vadd.f32 %v1142, %v1647
      %v1746 = vadd.f32 %v1147, %v1652
      %v1747 = vadd.f32 %v1152, %v1657
      %v1748 = vadd.f32 %v1157, %v1662
      %v1749 = vadd.f32 %v1162, %v1667
      %v1750 = vadd.f32 %v1167, %v1672
      %v1751 = vadd.f32 %v1172, %v1677
      %v1752 = vadd.f32 %v1177, %v1682
      %v1753 = vadd.f32 %v1182, %v1687
      %v1754 = vadd.f32 %v1187, %v1692
      %v1755 = vadd.f32 %v1192, %v1697
      %v1756 = vadd.f32 %v1197, %v1702
      %v1757 = vadd.f32 %v1202, %v1707
      %v1758 = vld [vmem:[%s2] sm:$0x1]
      %v1760 = vlaneseq
      %v1761 = vshrl.u32 %v1760, 7
      %v1762 = vsub.s32 0, %v1761
      %v1763 = vrot.slane %v1758, %v1762
      %v1765 = vadd.f32 %v1710, %v1763
      %v1766 = vadd.f32 %v1711, %v1763
      %v1767 = vadd.f32 %v1712, %v1763
      %v1768 = vadd.f32 %v1713, %v1763
      %v1769 = vadd.f32 %v1714, %v1763
      %v1770 = vadd.f32 %v1715, %v1763
      %v1771 = vadd.f32 %v1716, %v1763
      %v1772 = vadd.f32 %v1717, %v1763
      %v1773 = vadd.f32 %v1718, %v1763
      %v1774 = vadd.f32 %v1719, %v1763
      %v1775 = vadd.f32 %v1720, %v1763
      %v1776 = vadd.f32 %v1721, %v1763
      %v1777 = vadd.f32 %v1722, %v1763
      %v1778 = vadd.f32 %v1723, %v1763
      %v1779 = vadd.f32 %v1724, %v1763
      %v1780 = vadd.f32 %v1725, %v1763
      %v1781 = vadd.f32 %v1726, %v1763
      %v1782 = vadd.f32 %v1727, %v1763
      %v1783 = vadd.f32 %v1728, %v1763
      %v1784 = vadd.f32 %v1729, %v1763
      %v1785 = vadd.f32 %v1730, %v1763
      %v1786 = vadd.f32 %v1731, %v1763
      %v1787 = vadd.f32 %v1732, %v1763
      %v1788 = vadd.f32 %v1733, %v1763
      %v1789 = vadd.f32 %v1734, %v1763
      %v1790 = vadd.f32 %v1735, %v1763
      %v1791 = vadd.f32 %v1736, %v1763
      %v1792 = vadd.f32 %v1737, %v1763
      %v1793 = vadd.f32 %v1738, %v1763
      %v1794 = vadd.f32 %v1739, %v1763
      %v1795 = vadd.f32 %v1740, %v1763
      %v1796 = vadd.f32 %v1741, %v1763
      %v1797 = vadd.f32 %v1742, %v1763
      %v1798 = vadd.f32 %v1743, %v1763
      %v1799 = vadd.f32 %v1744, %v1763
      %v1800 = vadd.f32 %v1745, %v1763
      %v1801 = vadd.f32 %v1746, %v1763
      %v1802 = vadd.f32 %v1747, %v1763
      %v1803 = vadd.f32 %v1748, %v1763
      %v1804 = vadd.f32 %v1749, %v1763
      %v1805 = vadd.f32 %v1750, %v1763
      %v1806 = vadd.f32 %v1751, %v1763
      %v1807 = vadd.f32 %v1752, %v1763
      %v1808 = vadd.f32 %v1753, %v1763
      %v1809 = vadd.f32 %v1754, %v1763
      %v1810 = vadd.f32 %v1755, %v1763
      %v1811 = vadd.f32 %v1756, %v1763
      %v1812 = vadd.f32 %v1757, %v1763
      %v1813 = vmax.f32 %v1765, 0.0
      %v1814 = vmax.f32 %v1766, 0.0
      %v1815 = vmax.f32 %v1767, 0.0
      %v1816 = vmax.f32 %v1768, 0.0
      %v1817 = vmax.f32 %v1769, 0.0
      %v1818 = vmax.f32 %v1770, 0.0
      %v1819 = vmax.f32 %v1771, 0.0
      %v1820 = vmax.f32 %v1772, 0.0
      %v1821 = vmax.f32 %v1773, 0.0
      %v1822 = vmax.f32 %v1774, 0.0
      %v1823 = vmax.f32 %v1775, 0.0
      %v1824 = vmax.f32 %v1776, 0.0
      %v1825 = vmax.f32 %v1777, 0.0
      %v1826 = vmax.f32 %v1778, 0.0
      %v1827 = vmax.f32 %v1779, 0.0
      %v1828 = vmax.f32 %v1780, 0.0
      %v1829 = vmax.f32 %v1781, 0.0
      %v1830 = vmax.f32 %v1782, 0.0
      %v1831 = vmax.f32 %v1783, 0.0
      %v1832 = vmax.f32 %v1784, 0.0
      %v1833 = vmax.f32 %v1785, 0.0
      %v1834 = vmax.f32 %v1786, 0.0
      %v1835 = vmax.f32 %v1787, 0.0
      %v1836 = vmax.f32 %v1788, 0.0
      %v1837 = vmax.f32 %v1789, 0.0
      %v1838 = vmax.f32 %v1790, 0.0
      %v1839 = vmax.f32 %v1791, 0.0
      %v1840 = vmax.f32 %v1792, 0.0
      %v1841 = vmax.f32 %v1793, 0.0
      %v1842 = vmax.f32 %v1794, 0.0
      %v1843 = vmax.f32 %v1795, 0.0
      %v1844 = vmax.f32 %v1796, 0.0
      %v1845 = vmax.f32 %v1797, 0.0
      %v1846 = vmax.f32 %v1798, 0.0
      %v1847 = vmax.f32 %v1799, 0.0
      %v1848 = vmax.f32 %v1800, 0.0
      %v1849 = vmax.f32 %v1801, 0.0
      %v1850 = vmax.f32 %v1802, 0.0
      %v1851 = vmax.f32 %v1803, 0.0
      %v1852 = vmax.f32 %v1804, 0.0
      %v1853 = vmax.f32 %v1805, 0.0
      %v1854 = vmax.f32 %v1806, 0.0
      %v1855 = vmax.f32 %v1807, 0.0
      %v1856 = vmax.f32 %v1808, 0.0
      %v1857 = vmax.f32 %v1809, 0.0
      %v1858 = vmax.f32 %v1810, 0.0
      %v1859 = vmax.f32 %v1811, 0.0
      %v1860 = vmax.f32 %v1812, 0.0
      %1861 = vst [vmem:[%s192] sm:$0xff] %v1813
      %1862 = vst [vmem:[%s192 + $0x8] sm:$0xff] %v1814
      %1863 = vst [vmem:[%s192 + $0x10] sm:$0xff] %v1815
      %1864 = vst [vmem:[%s192 + $0x18] sm:$0xff] %v1816
      %1865 = vst [vmem:[%s192 + $0x20] sm:$0xff] %v1817
      %1866 = vst [vmem:[%s192 + $0x28] sm:$0xff] %v1818
      %1867 = vst [vmem:[%s192 + $0x30] sm:$0xff] %v1819
      %1868 = vst [vmem:[%s192 + $0x38] sm:$0xff] %v1820
      %1869 = vst [vmem:[%s192 + $0x40] sm:$0xff] %v1821
      %1870 = vst [vmem:[%s192 + $0x48] sm:$0xff] %v1822
      %1871 = vst [vmem:[%s192 + $0x50] sm:$0xff] %v1823
      %1872 = vst [vmem:[%s192 + $0x58] sm:$0xff] %v1824
      %1873 = vst [vmem:[%s192 + $0x60] sm:$0xff] %v1825
      %1874 = vst [vmem:[%s192 + $0x68] sm:$0xff] %v1826
      %1875 = vst [vmem:[%s192 + $0x70] sm:$0xff] %v1827
      %1876 = vst [vmem:[%s192 + $0x78] sm:$0xff] %v1828
      %1877 = vst [vmem:[%s192 + $0x80] sm:$0xff] %v1829
      %1878 = vst [vmem:[%s192 + $0x88] sm:$0xff] %v1830
      %1879 = vst [vmem:[%s192 + $0x90] sm:$0xff] %v1831
      %1880 = vst [vmem:[%s192 + $0x98] sm:$0xff] %v1832
      %1881 = vst [vmem:[%s192 + $0xa0] sm:$0xff] %v1833
      %1882 = vst [vmem:[%s192 + $0xa8] sm:$0xff] %v1834
      %1883 = vst [vmem:[%s192 + $0xb0] sm:$0xff] %v1835
      %1884 = vst [vmem:[%s192 + $0xb8] sm:$0xff] %v1836
      %1885 = vst [vmem:[%s192 + $0xc0] sm:$0xff] %v1837
      %1886 = vst [vmem:[%s192 + $0xc8] sm:$0xff] %v1838
      %1887 = vst [vmem:[%s192 + $0xd0] sm:$0xff] %v1839
      %1888 = vst [vmem:[%s192 + $0xd8] sm:$0xff] %v1840
      %1889 = vst [vmem:[%s192 + $0xe0] sm:$0xff] %v1841
      %1890 = vst [vmem:[%s192 + $0xe8] sm:$0xff] %v1842
      %1891 = vst [vmem:[%s192 + $0xf0] sm:$0xff] %v1843
      %1892 = vst [vmem:[%s192 + $0xf8] sm:$0xff] %v1844
      %1893 = vst [vmem:[%s192 + $0x100] sm:$0xff] %v1845
      %1894 = vst [vmem:[%s192 + $0x108] sm:$0xff] %v1846
      %1895 = vst [vmem:[%s192 + $0x110] sm:$0xff] %v1847
      %1896 = vst [vmem:[%s192 + $0x118] sm:$0xff] %v1848
      %1897 = vst [vmem:[%s192 + $0x120] sm:$0xff] %v1849
      %1898 = vst [vmem:[%s192 + $0x128] sm:$0xff] %v1850
      %1899 = vst [vmem:[%s192 + $0x130] sm:$0xff] %v1851
      %1900 = vst [vmem:[%s192 + $0x138] sm:$0xff] %v1852
      %1901 = vst [vmem:[%s192 + $0x140] sm:$0xff] %v1853
      %1902 = vst [vmem:[%s192 + $0x148] sm:$0xff] %v1854
      %1903 = vst [vmem:[%s192 + $0x150] sm:$0xff] %v1855
      %1904 = vst [vmem:[%s192 + $0x158] sm:$0xff] %v1856
      %1905 = vst [vmem:[%s192 + $0x160] sm:$0xff] %v1857
      %1906 = vst [vmem:[%s192 + $0x168] sm:$0xff] %v1858
      %1907 = vst [vmem:[%s192 + $0x170] sm:$0xff] %v1859
      %1908 = vst [vmem:[%s192 + $0x178] sm:$0xff] %v1860
      %s1909 = smul.u32 48, %s19
      %p1910 = scmp.lt.s32.totalorder %s18, 1
      %s1911 = scalar_select %p1910, %s18, 1
      %p1912 = scmp.lt.s32.totalorder %s1909, 47
      %s1913 = scalar_select %p1912, %s1909, 47
      %s1914 = smul.addr %s1911, 48
      %s1915 = sadd.s32 %s1913, %s1914
      %s1916 = smul.addr %s1915, 8
      %s1917 = scalar_lea.vmem %s3, %s1916
      // Predicated region
      $region33: #{single_conv_forward.1} parent=31 // pred_check
        %p1918 = pneg %p114
      $region34: #{single_conv_forward.1} parent=31 // pred_check_branch
        %1920 = sbr.rel (%p1918) target = $region36
      $region35: #{single_conv_forward.1} parent=31 // pred_region
        %s1921 = smul.u32 48, %s19
      $region36: #{single_conv_forward.1} parent=31 // pred_fallthru
        _
    $region32: #{single_conv_forward.1} parent=5 // pred_fallthru
      _
    %p1922 = scmp.le.s32.totalorder 2, %s9
    // Predicated region
    $region37: #{single_conv_forward.1} parent=5 // pred_check
      %p1923 = pneg %p1922
    $region38: #{single_conv_forward.1} parent=5 // pred_check_branch
      %1925 = sbr.rel (%p1923) target = $region40
    $region39: #{single_conv_forward.1} parent=5 // pred_region
      %s1926 = ssub.s32 %s9, 2
      // Predicated region
      $region41: #{single_conv_forward.1} parent=39 // pred_check
        %p1927 = pneg %p120
      $region42: #{single_conv_forward.1} parent=39 // pred_check_branch
        %1929 = sbr.rel (%p1927) target = $region44
      $region43: #{single_conv_forward.1} parent=39 // pred_region
        %s1930 = smul.u32 48, %s21
        %p1931 = scmp.lt.s32.totalorder %s20, 1
        %s1932 = scalar_select %p1931, %s20, 1
        %p1933 = scmp.lt.s32.totalorder %s1930, 47
        %s1934 = scalar_select %p1933, %s1930, 47
        %s1935 = smul.addr %s1932, 48
        %s1936 = sadd.s32 %s1934, %s1935
        %s1937 = smul.addr %s1936, 8
        %s1938 = scalar_lea.vmem %s3, %s1937
      $region44: #{single_conv_forward.1} parent=39 // pred_fallthru
        _
    $region40: #{single_conv_forward.1} parent=5 // pred_fallthru
      _
  $region6: #{single_conv_forward.1} parent=0 // loop_footer
    %s13 = sadd.s32 1, %s9
  $region7: #{single_conv_forward.1} parent=0 // loop_footer_branch
    %8 = sbr.rel target = $region3
  $region8: #{single_conv_forward.1} parent=0 // loop_exit
    _

</llo_original>
